<compile_context>
chip_gen: v5e
topology: v5e:2x2
jax: 0.10.0
libtpu: 0.0.40
codegen_flags: <defaults>
</compile_context>

<pallas_src>
import math
import jax
import jax.numpy as jnp
from jax.experimental import pallas as pl
from jax.experimental.pallas import tpu as pltpu

IN_DIM = 3          # p is (B, 3)
Z_DIM = 8           # latent code dim
MIN_DEG = 0
MAX_DEG = 4
HID = 128           # backbone hidden / output dim

X_DIM = IN_DIM * (1 + 2 * (MAX_DEG - MIN_DEG))   # pos-enc output dim (identity + sin/cos) = 27
D_IN = X_DIM + Z_DIM                              # backbone input dim = 35
HEAD_OUT = 8                                      # fused heads: [wx,wy,wz,0, vx,vy,vz,0]


# ------------------------------------------------------------------ glue (JAX)
def windowed_posenc(p, min_deg, max_deg, alpha):
    """Nerfies-style windowed positional encoding with identity: (B,C) -> (B, C*(1+2F))."""
    scales = 2.0 ** jnp.arange(min_deg, max_deg, dtype=jnp.float32)           # (F,)
    xb = p[:, None, :] * scales[:, None]                                       # (B,F,C)
    bands = jnp.arange(min_deg, max_deg, dtype=jnp.float32)
    win = 0.5 * (1.0 - jnp.cos(jnp.pi * jnp.clip(alpha - bands, 0.0, 1.0)))    # (F,)
    four = jnp.concatenate([jnp.sin(xb) * win[:, None],
                            jnp.cos(xb) * win[:, None]], axis=-2)              # (B,2F,C)
    return jnp.concatenate([p, four.reshape(p.shape[0], -1)], axis=-1)


# ------------------------------------------------------------------ Pallas kernel
def warp_kernel(x_ref, pT_ref, w0_ref, w4x_ref, w_hid_ref, b_ref, wh_ref, bh_ref,
                qT_ref):
    bf16 = jnp.bfloat16
    xb = x_ref[...].astype(bf16)                     # (TB, D_IN)

    def hidden_w(k):                                 # (HID, HID) bf16, aligned slice
        return w_hid_ref[k * HID:(k + 1) * HID, :]

    def bias(k):                                     # (1, HID) f32
        return b_ref[k:k + 1, :]

    def layer(h_bf, w, b):
        # bf16 x bf16 matmul with f32 accumulation on the MXU; bias add in f32;
        # ReLU on the bf16 value that feeds the next dot.
        a = jnp.dot(h_bf, w, preferred_element_type=jnp.float32) + b
        return jax.nn.relu(a.astype(bf16))

    # SkipCMLP: lnum=6, hidden=out=128, relu, skip-concat of the input at layer 4,
    # last_linear=False -> activation also after the last layer.
    h = layer(xb, w0_ref[...], bias(0))
    h = layer(h, hidden_w(0), bias(1))
    h = layer(h, hidden_w(1), bias(2))
    h = layer(h, hidden_w(2), bias(3))
    # skip: concat([h, x]) @ W4  ==  h @ W4h + x @ W4x   (avoids an in-kernel concat)
    a4 = (jnp.dot(h, hidden_w(3), preferred_element_type=jnp.float32)
          + jnp.dot(xb, w4x_ref[...], preferred_element_type=jnp.float32)
          + bias(4))
    h = jax.nn.relu(a4.astype(bf16))
    h = layer(h, hidden_w(4), bias(5))

    # fused heads (128 -> 8): bf16 MXU with f32 accumulation, f32 bias.
    head = jnp.dot(h, wh_ref[...], preferred_element_type=jnp.float32) + bh_ref[...]  # (TB, 8)
    ht = jnp.transpose(head)                                                           # (8, TB) via XLU

    # ---------------- lane-dense SE(3) epilogue: batch lives in the lane axis ----
    wx, wy, wz = ht[0:1, :], ht[1:2, :], ht[2:3, :]          # rotation axis*angle rows
    vx, vy, vz = ht[4:5, :], ht[5:6, :], ht[6:7, :]          # translation generator rows
    px, py, pz = pT_ref[0:1, :], pT_ref[1:2, :], pT_ref[2:3, :]

    theta = jnp.sqrt(wx * wx + wy * wy + wz * wz)            # (1, TB)
    inv = pl.reciprocal(theta + 1e-12, approx=True)          # EUP slot
    ux, uy, uz = wx * inv, wy * inv, wz * inv                # unit axis
    vx, vy, vz = vx * inv, vy * inv, vz * inv                # normalized generator

    st = jnp.sin(theta)
    ct = jnp.cos(theta)
    omc = 1.0 - ct
    tms = theta - st

    # cross products, componentwise (no lane-axis concat)
    cpx = uy * pz - uz * py
    cpy = uz * px - ux * pz
    cpz = ux * py - uy * px
    cvx = uy * vz - uz * vy
    cvy = uz * vx - ux * vz
    cvz = ux * vy - uy * vx

    wdp = ux * px + uy * py + uz * pz
    wdv = ux * vx + uy * vy + uz * vz
    cu = omc * wdp

    # b_exp_se3 (Rodrigues, unit axis u, angle theta):
    #   R p = cos(t) p + sin(t) (u x p) + (1-cos(t)) u (u.p)
    #   G v = t v + (1-cos(t)) (u x v) + (t - sin(t)) (u (u.v) - v)
    qx = (ct * px + st * cpx + cu * ux) + (theta * vx + omc * cvx + tms * (wdv * ux - vx))
    qy = (ct * py + st * cpy + cu * uy) + (theta * vy + omc * cvy + tms * (wdv * uy - vy))
    qz = (ct * pz + st * cpz + cu * uz) + (theta * vz + omc * cvz + tms * (wdv * uz - vz))

    # lane-dense stores (full-lane rows of the (3, TB) output block)
    qT_ref[0:1, :] = qx
    qT_ref[1:2, :] = qy
    qT_ref[2:3, :] = qz


def _pick_tb(B):
    # Lane-dense (3, TB) blocks need TB % 128 == 0 unless TB == padded batch.
    if B <= 128:
        return max(8, ((B + 7) // 8) * 8)          # single tile; block == full array
    # Prefer an even grid of >= 2 steps (v7x has 2 TensorCores) with a big tile
    # to amortize the ~0.35 us per-step overhead.
    for tb in (512, 256, 128):
        if B % tb == 0 and (B // tb) % 2 == 0:
            return tb
    for tb in (512, 256, 128):
        if 2 * tb <= B:
            return tb
    return 128


def warp_field_pallas(p, z, params, win_a=1.0):
    B = p.shape[0]
    TB = _pick_tb(B)
    Bp = ((B + TB - 1) // TB) * TB
    if Bp != B:
        p_in = jnp.pad(p, ((0, Bp - B), (0, 0)))
        z_in = jnp.pad(z, ((0, Bp - B), (0, 0)))
    else:
        p_in, z_in = p, z

    p2 = windowed_posenc(p_in, MIN_DEG, MAX_DEG, alpha=win_a * MAX_DEG)
    x = jnp.concatenate([p2, z_in], axis=-1)                           # (Bp, D_IN)
    pT = p_in.T                                                        # (3, Bp) lane-dense

    (w0, b0, w1, b1, w2, b2, w3, b3, w4h, w4x, b4, w5, b5, ww, bw, wt, bt) = params
    bf = jnp.bfloat16
    # Collapse parameter streams: 5 hidden weights -> one (640,128), 6 biases -> (6,128).
    w_hid = jnp.concatenate([w1, w2, w3, w4h, w5], axis=0).astype(bf)  # (5*HID, HID) bf16
    bias = jnp.concatenate([b0, b1, b2, b3, b4, b5], axis=0)           # (6, HID) f32
    zc = jnp.zeros((HID, 1), jnp.float32)
    zb = jnp.zeros((1, 1), jnp.float32)
    wh = jnp.concatenate([ww, zc, wt, zc], axis=1).astype(bf)          # (HID, 8) bf16
    bh = jnp.concatenate([bw, zb, bt, zb], axis=1)                     # (1, 8) f32
    w0b = w0.astype(bf)                                                # (D_IN, HID) bf16
    w4xb = w4x.astype(bf)                                              # (D_IN, HID) bf16

    const2d = lambda i: (0, 0)
    in_specs = [
        pl.BlockSpec((TB, D_IN), lambda i: (i, 0)),     # x rows
        pl.BlockSpec((3, TB), lambda i: (0, i)),        # p transposed (lane-dense)
        pl.BlockSpec(w0b.shape, const2d),
        pl.BlockSpec(w4xb.shape, const2d),
        pl.BlockSpec(w_hid.shape, const2d),
        pl.BlockSpec(bias.shape, const2d),
        pl.BlockSpec(wh.shape, const2d),
        pl.BlockSpec(bh.shape, const2d),
    ]

    qT = pl.pallas_call(
        warp_kernel,
        out_shape=jax.ShapeDtypeStruct((3, Bp), jnp.float32),
        grid=(Bp // TB,),
        in_specs=in_specs,
        out_specs=pl.BlockSpec((3, TB), lambda i: (0, i)),
        compiler_params=pltpu.CompilerParams(dimension_semantics=("parallel",)),
    )(x, pT, w0b, w4xb, w_hid, bias, wh, bh)
    return qT.T[:B]


# ------------------------------------------------------------------ reference (pure JAX, f32)
def warp_field_ref(p, z, params, win_a=1.0):
    p2 = windowed_posenc(p, MIN_DEG, MAX_DEG, alpha=win_a * MAX_DEG)
    x = jnp.concatenate([p2, z], axis=-1)
    (w0, b0, w1, b1, w2, b2, w3, b3, w4h, w4x, b4, w5, b5, ww, bw, wt, bt) = params
    h = jax.nn.relu(x @ w0 + b0)
    h = jax.nn.relu(h @ w1 + b1)
    h = jax.nn.relu(h @ w2 + b2)
    h = jax.nn.relu(h @ w3 + b3)
    h = jax.nn.relu(h @ w4h + x @ w4x + b4)
    h = jax.nn.relu(h @ w5 + b5)
    w_raw = h @ ww + bw
    v_raw = h @ wt + bt
    theta = jnp.linalg.norm(w_raw, axis=-1, keepdims=True)
    w = w_raw / (theta + 1e-12)
    v = v_raw / (theta + 1e-12)
    st, ct = jnp.sin(theta), jnp.cos(theta)
    wxp = jnp.cross(w, p)
    wxv = jnp.cross(w, v)
    wdp = jnp.sum(w * p, -1, keepdims=True)
    wdv = jnp.sum(w * v, -1, keepdims=True)
    Rp = ct * p + st * wxp + (1.0 - ct) * wdp * w
    Gv = theta * v + (1.0 - ct) * wxv + (theta - st) * (wdv * w - v)
    return Rp + Gv


# ------------------------------------------------------------------ deterministic params
def init_params(key):
    ks = iter(jax.random.split(key, 32))

    def lin(din, dout):
        s = 1.0 / math.sqrt(din)
        W = jax.random.uniform(next(ks), (din, dout), jnp.float32, -s, s)
        b = jax.random.uniform(next(ks), (1, dout), jnp.float32, -s, s)
        return W, b

    w0, b0 = lin(D_IN, HID)
    w1, b1 = lin(HID, HID)
    w2, b2 = lin(HID, HID)
    w3, b3 = lin(HID, HID)
    # layer 4 takes concat([h, x]); store it pre-split as W4h (HID,HID) / W4x (D_IN,HID)
    s4 = 1.0 / math.sqrt(HID + D_IN)
    w4h = jax.random.uniform(next(ks), (HID, HID), jnp.float32, -s4, s4)
    w4x = jax.random.uniform(next(ks), (D_IN, HID), jnp.float32, -s4, s4)
    b4 = jax.random.uniform(next(ks), (1, HID), jnp.float32, -s4, s4)
    w5, b5 = lin(HID, HID)
    # heads: nn.init.uniform_(weight, 0, 1e-4), bias = 0   (as in WarpField.__init__)
    ww = jax.random.uniform(next(ks), (HID, 3), jnp.float32, 0.0, 1e-4)
    bw = jnp.zeros((1, 3), jnp.float32)
    wt = jax.random.uniform(next(ks), (HID, 3), jnp.float32, 0.0, 1e-4)
    bt = jnp.zeros((1, 3), jnp.float32)
    return (w0, b0, w1, b1, w2, b2, w3, b3, w4h, w4x, b4, w5, b5, ww, bw, wt, bt)


if __name__ == "__main__":
    key = jax.random.PRNGKey(0)
    kp, kz, kw = jax.random.split(key, 3)

    B = 256   # TB=128 -> grid of 2 (keeps both v7x TensorCores busy)
    p = jax.random.normal(kp, (B, IN_DIM), jnp.float32)
    z = jax.random.normal(kz, (B, Z_DIM), jnp.float32)
    params = init_params(kw)

    q = warp_field_pallas(p, z, params, win_a=1.0)
    q = jax.block_until_ready(q)

    q_ref = jax.block_until_ready(warp_field_ref(p, z, params, win_a=1.0))
    assert q.shape == (B, 3)
    # bf16 backbone/head + approx reciprocal vs f32 reference -> loosened tolerance.
    assert jnp.allclose(q, q_ref, atol=1e-2, rtol=1e-2), "mismatch vs JAX reference"

    # TODO(synk): WindowedPosEncoder / SkipCMLP / b_exp_se3 sources were not provided;
    # they are re-implemented with the standard Nerfies / NeRF-skip / SE(3)-exp semantics.
    print("KERNEL_OK")
</pallas_src>

<mosaic_0001>
module attributes {stable_mosaic.version = 11 : i64} {
  func.func @warp_kernel(%arg0: i32, %arg1: memref<128x35xf32, #tpu.memory_space<vmem>>, %arg2: memref<3x128xf32, #tpu.memory_space<vmem>>, %arg3: memref<35x128xbf16, #tpu.memory_space<vmem>>, %arg4: memref<35x128xbf16, #tpu.memory_space<vmem>>, %arg5: memref<640x128xbf16, #tpu.memory_space<vmem>>, %arg6: memref<6x128xf32, #tpu.memory_space<vmem>>, %arg7: memref<128x8xbf16, #tpu.memory_space<vmem>>, %arg8: memref<1x8xf32, #tpu.memory_space<vmem>>, %arg9: memref<3x128xf32, #tpu.memory_space<vmem>>) attributes {dimension_semantics = [#tpu.dimension_semantics<parallel>], iteration_bounds = array<i64: 2>, scalar_prefetch = 0 : i64, scratch_operands = 0 : i64, tpu.core_type = #tpu.core_type<tc>, window_params = [{transform_indices = @transform_0, window_bounds = array<i64: 128, 35>}, {transform_indices = @transform_1, window_bounds = array<i64: 3, 128>}, {pipeline_mode = #tpu.pipeline_mode<synchronous>, transform_indices = @transform_2, window_bounds = array<i64: 35, 128>}, {pipeline_mode = #tpu.pipeline_mode<synchronous>, transform_indices = @transform_3, window_bounds = array<i64: 35, 128>}, {pipeline_mode = #tpu.pipeline_mode<synchronous>, transform_indices = @transform_4, window_bounds = array<i64: 640, 128>}, {pipeline_mode = #tpu.pipeline_mode<synchronous>, transform_indices = @transform_5, window_bounds = array<i64: 6, 128>}, {pipeline_mode = #tpu.pipeline_mode<synchronous>, transform_indices = @transform_6, window_bounds = array<i64: 128, 8>}, {pipeline_mode = #tpu.pipeline_mode<synchronous>, transform_indices = @transform_7, window_bounds = array<i64: 1, 8>}, {transform_indices = @transform_8, window_bounds = array<i64: 3, 128>}]} {
    %c0 = arith.constant 0 : index
    %c0_0 = arith.constant 0 : index
    %0 = vector.load %arg1[%c0, %c0_0] : memref<128x35xf32, #tpu.memory_space<vmem>>, vector<128x35xf32>
    %1 = arith.truncf %0 : vector<128x35xf32> to vector<128x35xbf16>
    %c0_1 = arith.constant 0 : index
    %c0_2 = arith.constant 0 : index
    %2 = vector.load %arg3[%c0_1, %c0_2] : memref<35x128xbf16, #tpu.memory_space<vmem>>, vector<35x128xbf16>
    %c0_3 = arith.constant 0 : index
    %c0_4 = arith.constant 0 : index
    %3 = vector.load %arg6[%c0_3, %c0_4] : memref<6x128xf32, #tpu.memory_space<vmem>>, vector<1x128xf32>
    %cst = arith.constant dense<0.000000e+00> : vector<128x128xf32>
    %4 = tpu.matmul %1, %2, %cst {dimension_numbers = #tpu.dot_dimension_numbers<[1], [0], [0], [1], [0, 0, 1, 1], [], []>} : vector<128x35xbf16>, vector<35x128xbf16>, vector<128x128xf32> -> vector<128x128xf32>
    %5 = vector.broadcast %3 : vector<1x128xf32> to vector<128x128xf32>
    %6 = arith.addf %4, %5 : vector<128x128xf32>
    %7 = arith.truncf %6 : vector<128x128xf32> to vector<128x128xbf16>
    %cst_5 = arith.constant 0.000000e+00 : bf16
    %8 = vector.broadcast %cst_5 : bf16 to vector<128x128xbf16>
    %9 = arith.maximumf %7, %8 : vector<128x128xbf16>
    %c0_6 = arith.constant 0 : index
    %c0_7 = arith.constant 0 : index
    %10 = vector.load %arg5[%c0_6, %c0_7] : memref<640x128xbf16, #tpu.memory_space<vmem>>, vector<128x128xbf16>
    %c1 = arith.constant 1 : index
    %c0_8 = arith.constant 0 : index
    %11 = vector.load %arg6[%c1, %c0_8] : memref<6x128xf32, #tpu.memory_space<vmem>>, vector<1x128xf32>
    %cst_9 = arith.constant dense<0.000000e+00> : vector<128x128xf32>
    %12 = tpu.matmul %9, %10, %cst_9 {dimension_numbers = #tpu.dot_dimension_numbers<[1], [0], [0], [1], [0, 0, 1, 1], [], []>} : vector<128x128xbf16>, vector<128x128xbf16>, vector<128x128xf32> -> vector<128x128xf32>
    %13 = vector.broadcast %11 : vector<1x128xf32> to vector<128x128xf32>
    %14 = arith.addf %12, %13 : vector<128x128xf32>
    %15 = arith.truncf %14 : vector<128x128xf32> to vector<128x128xbf16>
    %cst_10 = arith.constant 0.000000e+00 : bf16
    %16 = vector.broadcast %cst_10 : bf16 to vector<128x128xbf16>
    %17 = arith.maximumf %15, %16 : vector<128x128xbf16>
    %c128 = arith.constant 128 : index
    %c0_11 = arith.constant 0 : index
    %18 = vector.load %arg5[%c128, %c0_11] : memref<640x128xbf16, #tpu.memory_space<vmem>>, vector<128x128xbf16>
    %c2 = arith.constant 2 : index
    %c0_12 = arith.constant 0 : index
    %19 = vector.load %arg6[%c2, %c0_12] : memref<6x128xf32, #tpu.memory_space<vmem>>, vector<1x128xf32>
    %cst_13 = arith.constant dense<0.000000e+00> : vector<128x128xf32>
    %20 = tpu.matmul %17, %18, %cst_13 {dimension_numbers = #tpu.dot_dimension_numbers<[1], [0], [0], [1], [0, 0, 1, 1], [], []>} : vector<128x128xbf16>, vector<128x128xbf16>, vector<128x128xf32> -> vector<128x128xf32>
    %21 = vector.broadcast %19 : vector<1x128xf32> to vector<128x128xf32>
    %22 = arith.addf %20, %21 : vector<128x128xf32>
    %23 = arith.truncf %22 : vector<128x128xf32> to vector<128x128xbf16>
    %cst_14 = arith.constant 0.000000e+00 : bf16
    %24 = vector.broadcast %cst_14 : bf16 to vector<128x128xbf16>
    %25 = arith.maximumf %23, %24 : vector<128x128xbf16>
    %c256 = arith.constant 256 : index
    %c0_15 = arith.constant 0 : index
    %26 = vector.load %arg5[%c256, %c0_15] : memref<640x128xbf16, #tpu.memory_space<vmem>>, vector<128x128xbf16>
    %c3 = arith.constant 3 : index
    %c0_16 = arith.constant 0 : index
    %27 = vector.load %arg6[%c3, %c0_16] : memref<6x128xf32, #tpu.memory_space<vmem>>, vector<1x128xf32>
    %cst_17 = arith.constant dense<0.000000e+00> : vector<128x128xf32>
    %28 = tpu.matmul %25, %26, %cst_17 {dimension_numbers = #tpu.dot_dimension_numbers<[1], [0], [0], [1], [0, 0, 1, 1], [], []>} : vector<128x128xbf16>, vector<128x128xbf16>, vector<128x128xf32> -> vector<128x128xf32>
    %29 = vector.broadcast %27 : vector<1x128xf32> to vector<128x128xf32>
    %30 = arith.addf %28, %29 : vector<128x128xf32>
    %31 = arith.truncf %30 : vector<128x128xf32> to vector<128x128xbf16>
    %cst_18 = arith.constant 0.000000e+00 : bf16
    %32 = vector.broadcast %cst_18 : bf16 to vector<128x128xbf16>
    %33 = arith.maximumf %31, %32 : vector<128x128xbf16>
    %c384 = arith.constant 384 : index
    %c0_19 = arith.constant 0 : index
    %34 = vector.load %arg5[%c384, %c0_19] : memref<640x128xbf16, #tpu.memory_space<vmem>>, vector<128x128xbf16>
    %cst_20 = arith.constant dense<0.000000e+00> : vector<128x128xf32>
    %35 = tpu.matmul %33, %34, %cst_20 {dimension_numbers = #tpu.dot_dimension_numbers<[1], [0], [0], [1], [0, 0, 1, 1], [], []>} : vector<128x128xbf16>, vector<128x128xbf16>, vector<128x128xf32> -> vector<128x128xf32>
    %c0_21 = arith.constant 0 : index
    %c0_22 = arith.constant 0 : index
    %36 = vector.load %arg4[%c0_21, %c0_22] : memref<35x128xbf16, #tpu.memory_space<vmem>>, vector<35x128xbf16>
    %cst_23 = arith.constant dense<0.000000e+00> : vector<128x128xf32>
    %37 = tpu.matmul %1, %36, %cst_23 {dimension_numbers = #tpu.dot_dimension_numbers<[1], [0], [0], [1], [0, 0, 1, 1], [], []>} : vector<128x35xbf16>, vector<35x128xbf16>, vector<128x128xf32> -> vector<128x128xf32>
    %38 = arith.addf %35, %37 : vector<128x128xf32>
    %c4 = arith.constant 4 : index
    %c0_24 = arith.constant 0 : index
    %39 = vector.load %arg6[%c4, %c0_24] : memref<6x128xf32, #tpu.memory_space<vmem>>, vector<1x128xf32>
    %40 = vector.broadcast %39 : vector<1x128xf32> to vector<128x128xf32>
    %41 = arith.addf %38, %40 : vector<128x128xf32>
    %42 = arith.truncf %41 : vector<128x128xf32> to vector<128x128xbf16>
    %cst_25 = arith.constant 0.000000e+00 : bf16
    %43 = vector.broadcast %cst_25 : bf16 to vector<128x128xbf16>
    %44 = arith.maximumf %42, %43 : vector<128x128xbf16>
    %c512 = arith.constant 512 : index
    %c0_26 = arith.constant 0 : index
    %45 = vector.load %arg5[%c512, %c0_26] : memref<640x128xbf16, #tpu.memory_space<vmem>>, vector<128x128xbf16>
    %c5 = arith.constant 5 : index
    %c0_27 = arith.constant 0 : index
    %46 = vector.load %arg6[%c5, %c0_27] : memref<6x128xf32, #tpu.memory_space<vmem>>, vector<1x128xf32>
    %cst_28 = arith.constant dense<0.000000e+00> : vector<128x128xf32>
    %47 = tpu.matmul %44, %45, %cst_28 {dimension_numbers = #tpu.dot_dimension_numbers<[1], [0], [0], [1], [0, 0, 1, 1], [], []>} : vector<128x128xbf16>, vector<128x128xbf16>, vector<128x128xf32> -> vector<128x128xf32>
    %48 = vector.broadcast %46 : vector<1x128xf32> to vector<128x128xf32>
    %49 = arith.addf %47, %48 : vector<128x128xf32>
    %50 = arith.truncf %49 : vector<128x128xf32> to vector<128x128xbf16>
    %cst_29 = arith.constant 0.000000e+00 : bf16
    %51 = vector.broadcast %cst_29 : bf16 to vector<128x128xbf16>
    %52 = arith.maximumf %50, %51 : vector<128x128xbf16>
    %c0_30 = arith.constant 0 : index
    %c0_31 = arith.constant 0 : index
    %53 = vector.load %arg7[%c0_30, %c0_31] : memref<128x8xbf16, #tpu.memory_space<vmem>>, vector<128x8xbf16>
    %cst_32 = arith.constant dense<0.000000e+00> : vector<128x8xf32>
    %54 = tpu.matmul %52, %53, %cst_32 {dimension_numbers = #tpu.dot_dimension_numbers<[1], [0], [0], [1], [0, 0, 1, 1], [], []>} : vector<128x128xbf16>, vector<128x8xbf16>, vector<128x8xf32> -> vector<128x8xf32>
    %c0_33 = arith.constant 0 : index
    %c0_34 = arith.constant 0 : index
    %55 = vector.load %arg8[%c0_33, %c0_34] : memref<1x8xf32, #tpu.memory_space<vmem>>, vector<1x8xf32>
    %56 = vector.broadcast %55 : vector<1x8xf32> to vector<128x8xf32>
    %57 = arith.addf %54, %56 : vector<128x8xf32>
    %58 = tpu.transpose %57, [1, 0] : vector<128x8xf32> -> vector<8x128xf32>
    %59 = vector.extract_strided_slice %58 {offsets = [0, 0], sizes = [1, 128], strides = [1, 1]} : vector<8x128xf32> to vector<1x128xf32>
    %60 = vector.extract_strided_slice %58 {offsets = [1, 0], sizes = [1, 128], strides = [1, 1]} : vector<8x128xf32> to vector<1x128xf32>
    %61 = vector.extract_strided_slice %58 {offsets = [2, 0], sizes = [1, 128], strides = [1, 1]} : vector<8x128xf32> to vector<1x128xf32>
    %62 = vector.extract_strided_slice %58 {offsets = [4, 0], sizes = [1, 128], strides = [1, 1]} : vector<8x128xf32> to vector<1x128xf32>
    %63 = vector.extract_strided_slice %58 {offsets = [5, 0], sizes = [1, 128], strides = [1, 1]} : vector<8x128xf32> to vector<1x128xf32>
    %64 = vector.extract_strided_slice %58 {offsets = [6, 0], sizes = [1, 128], strides = [1, 1]} : vector<8x128xf32> to vector<1x128xf32>
    %c0_35 = arith.constant 0 : index
    %c0_36 = arith.constant 0 : index
    %65 = vector.load %arg2[%c0_35, %c0_36] : memref<3x128xf32, #tpu.memory_space<vmem>>, vector<1x128xf32>
    %c1_37 = arith.constant 1 : index
    %c0_38 = arith.constant 0 : index
    %66 = vector.load %arg2[%c1_37, %c0_38] : memref<3x128xf32, #tpu.memory_space<vmem>>, vector<1x128xf32>
    %c2_39 = arith.constant 2 : index
    %c0_40 = arith.constant 0 : index
    %67 = vector.load %arg2[%c2_39, %c0_40] : memref<3x128xf32, #tpu.memory_space<vmem>>, vector<1x128xf32>
    %68 = arith.mulf %59, %59 : vector<1x128xf32>
    %69 = arith.mulf %60, %60 : vector<1x128xf32>
    %70 = arith.addf %68, %69 : vector<1x128xf32>
    %71 = arith.mulf %61, %61 : vector<1x128xf32>
    %72 = arith.addf %70, %71 : vector<1x128xf32>
    %73 = math.sqrt %72 : vector<1x128xf32>
    %cst_41 = arith.constant 9.99999996E-13 : f32
    %74 = vector.broadcast %cst_41 : f32 to vector<1x128xf32>
    %75 = arith.addf %73, %74 : vector<1x128xf32>
    %76 = tpu.reciprocal %75 {approx = true} : vector<1x128xf32> -> vector<1x128xf32>
    %77 = arith.mulf %59, %76 : vector<1x128xf32>
    %78 = arith.mulf %60, %76 : vector<1x128xf32>
    %79 = arith.mulf %61, %76 : vector<1x128xf32>
    %80 = arith.mulf %62, %76 : vector<1x128xf32>
    %81 = arith.mulf %63, %76 : vector<1x128xf32>
    %82 = arith.mulf %64, %76 : vector<1x128xf32>
    %83 = math.sin %73 : vector<1x128xf32>
    %84 = math.cos %73 : vector<1x128xf32>
    %cst_42 = arith.constant 1.000000e+00 : f32
    %85 = vector.broadcast %cst_42 : f32 to vector<1x128xf32>
    %86 = arith.subf %85, %84 : vector<1x128xf32>
    %87 = arith.subf %73, %83 : vector<1x128xf32>
    %88 = arith.mulf %78, %67 : vector<1x128xf32>
    %89 = arith.mulf %79, %66 : vector<1x128xf32>
    %90 = arith.subf %88, %89 : vector<1x128xf32>
    %91 = arith.mulf %79, %65 : vector<1x128xf32>
    %92 = arith.mulf %77, %67 : vector<1x128xf32>
    %93 = arith.subf %91, %92 : vector<1x128xf32>
    %94 = arith.mulf %77, %66 : vector<1x128xf32>
    %95 = arith.mulf %78, %65 : vector<1x128xf32>
    %96 = arith.subf %94, %95 : vector<1x128xf32>
    %97 = arith.mulf %78, %82 : vector<1x128xf32>
    %98 = arith.mulf %79, %81 : vector<1x128xf32>
    %99 = arith.subf %97, %98 : vector<1x128xf32>
    %100 = arith.mulf %79, %80 : vector<1x128xf32>
    %101 = arith.mulf %77, %82 : vector<1x128xf32>
    %102 = arith.subf %100, %101 : vector<1x128xf32>
    %103 = arith.mulf %77, %81 : vector<1x128xf32>
    %104 = arith.mulf %78, %80 : vector<1x128xf32>
    %105 = arith.subf %103, %104 : vector<1x128xf32>
    %106 = arith.mulf %77, %65 : vector<1x128xf32>
    %107 = arith.mulf %78, %66 : vector<1x128xf32>
    %108 = arith.addf %106, %107 : vector<1x128xf32>
    %109 = arith.mulf %79, %67 : vector<1x128xf32>
    %110 = arith.addf %108, %109 : vector<1x128xf32>
    %111 = arith.mulf %77, %80 : vector<1x128xf32>
    %112 = arith.mulf %78, %81 : vector<1x128xf32>
    %113 = arith.addf %111, %112 : vector<1x128xf32>
    %114 = arith.mulf %79, %82 : vector<1x128xf32>
    %115 = arith.addf %113, %114 : vector<1x128xf32>
    %116 = arith.mulf %86, %110 : vector<1x128xf32>
    %117 = arith.mulf %84, %65 : vector<1x128xf32>
    %118 = arith.mulf %83, %90 : vector<1x128xf32>
    %119 = arith.addf %117, %118 : vector<1x128xf32>
    %120 = arith.mulf %116, %77 : vector<1x128xf32>
    %121 = arith.addf %119, %120 : vector<1x128xf32>
    %122 = arith.mulf %73, %80 : vector<1x128xf32>
    %123 = arith.mulf %86, %99 : vector<1x128xf32>
    %124 = arith.addf %122, %123 : vector<1x128xf32>
    %125 = arith.mulf %115, %77 : vector<1x128xf32>
    %126 = arith.subf %125, %80 : vector<1x128xf32>
    %127 = arith.mulf %87, %126 : vector<1x128xf32>
    %128 = arith.addf %124, %127 : vector<1x128xf32>
    %129 = arith.addf %121, %128 : vector<1x128xf32>
    %130 = arith.mulf %84, %66 : vector<1x128xf32>
    %131 = arith.mulf %83, %93 : vector<1x128xf32>
    %132 = arith.addf %130, %131 : vector<1x128xf32>
    %133 = arith.mulf %116, %78 : vector<1x128xf32>
    %134 = arith.addf %132, %133 : vector<1x128xf32>
    %135 = arith.mulf %73, %81 : vector<1x128xf32>
    %136 = arith.mulf %86, %102 : vector<1x128xf32>
    %137 = arith.addf %135, %136 : vector<1x128xf32>
    %138 = arith.mulf %115, %78 : vector<1x128xf32>
    %139 = arith.subf %138, %81 : vector<1x128xf32>
    %140 = arith.mulf %87, %139 : vector<1x128xf32>
    %141 = arith.addf %137, %140 : vector<1x128xf32>
    %142 = arith.addf %134, %141 : vector<1x128xf32>
    %143 = arith.mulf %84, %67 : vector<1x128xf32>
    %144 = arith.mulf %83, %96 : vector<1x128xf32>
    %145 = arith.addf %143, %144 : vector<1x128xf32>
    %146 = arith.mulf %116, %79 : vector<1x128xf32>
    %147 = arith.addf %145, %146 : vector<1x128xf32>
    %148 = arith.mulf %73, %82 : vector<1x128xf32>
    %149 = arith.mulf %86, %105 : vector<1x128xf32>
    %150 = arith.addf %148, %149 : vector<1x128xf32>
    %151 = arith.mulf %115, %79 : vector<1x128xf32>
    %152 = arith.subf %151, %82 : vector<1x128xf32>
    %153 = arith.mulf %87, %152 : vector<1x128xf32>
    %154 = arith.addf %150, %153 : vector<1x128xf32>
    %155 = arith.addf %147, %154 : vector<1x128xf32>
    %c0_43 = arith.constant 0 : index
    %c0_44 = arith.constant 0 : index
    %156 = vector.load %arg9[%c0_43, %c0_44] : memref<3x128xf32, #tpu.memory_space<vmem>>, vector<1x128xf32>
    tpu.vector_store %arg9[%c0_43, %c0_44], %129 {strides = array<i32>} : memref<3x128xf32, #tpu.memory_space<vmem>>, vector<1x128xf32>,
    %c1_45 = arith.constant 1 : index
    %c0_46 = arith.constant 0 : index
    %157 = vector.load %arg9[%c1_45, %c0_46] : memref<3x128xf32, #tpu.memory_space<vmem>>, vector<1x128xf32>
    tpu.vector_store %arg9[%c1_45, %c0_46], %142 {strides = array<i32>} : memref<3x128xf32, #tpu.memory_space<vmem>>, vector<1x128xf32>,
    %c2_47 = arith.constant 2 : index
    %c0_48 = arith.constant 0 : index
    %158 = vector.load %arg9[%c2_47, %c0_48] : memref<3x128xf32, #tpu.memory_space<vmem>>, vector<1x128xf32>
    tpu.vector_store %arg9[%c2_47, %c0_48], %155 {strides = array<i32>} : memref<3x128xf32, #tpu.memory_space<vmem>>, vector<1x128xf32>,
    return
  }
  func.func @transform_0(%arg0: i32) -> (i32, i32) {
    %c0_i32 = arith.constant 0 : i32
    %c0_i32_0 = arith.constant 0 : i32
    return %arg0, %c0_i32 : i32, i32
  }
  func.func @transform_1(%arg0: i32) -> (i32, i32) {
    %c0_i32 = arith.constant 0 : i32
    %c0_i32_0 = arith.constant 0 : i32
    return %c0_i32, %arg0 : i32, i32
  }
  func.func @transform_2(%arg0: i32) -> (i32, i32) {
    %c0_i32 = arith.constant 0 : i32
    %c0_i32_0 = arith.constant 0 : i32
    %c0_i32_1 = arith.constant 0 : i32
    return %c0_i32, %c0_i32_0 : i32, i32
  }
  func.func @transform_3(%arg0: i32) -> (i32, i32) {
    %c0_i32 = arith.constant 0 : i32
    %c0_i32_0 = arith.constant 0 : i32
    %c0_i32_1 = arith.constant 0 : i32
    return %c0_i32, %c0_i32_0 : i32, i32
  }
  func.func @transform_4(%arg0: i32) -> (i32, i32) {
    %c0_i32 = arith.constant 0 : i32
    %c0_i32_0 = arith.constant 0 : i32
    %c0_i32_1 = arith.constant 0 : i32
    return %c0_i32, %c0_i32_0 : i32, i32
  }
  func.func @transform_5(%arg0: i32) -> (i32, i32) {
    %c0_i32 = arith.constant 0 : i32
    %c0_i32_0 = arith.constant 0 : i32
    %c0_i32_1 = arith.constant 0 : i32
    return %c0_i32, %c0_i32_0 : i32, i32
  }
  func.func @transform_6(%arg0: i32) -> (i32, i32) {
    %c0_i32 = arith.constant 0 : i32
    %c0_i32_0 = arith.constant 0 : i32
    %c0_i32_1 = arith.constant 0 : i32
    return %c0_i32, %c0_i32_0 : i32, i32
  }
  func.func @transform_7(%arg0: i32) -> (i32, i32) {
    %c0_i32 = arith.constant 0 : i32
    %c0_i32_0 = arith.constant 0 : i32
    %c0_i32_1 = arith.constant 0 : i32
    return %c0_i32, %c0_i32_0 : i32, i32
  }
  func.func @transform_8(%arg0: i32) -> (i32, i32) {
    %c0_i32 = arith.constant 0 : i32
    %c0_i32_0 = arith.constant 0 : i32
    return %c0_i32, %arg0 : i32, i32
  }
}

</mosaic_0001>

<llo_original>
// kernel: tpu_custom_call.1
$region0: #{tpu_custom_call.1}
  #allocation0 [shape = 'u32[]', space=smem, size = 0x4, offset = 0x4, fixed_abs, tag = 'smem constant byte address 0x4 - core index']
  #allocation1 [shape = 'u32[72,128]{1,0:T(1,128)}', space=vmem, size = 0x9000, scoped, tag = 'internal scratch']
  %s0 = inlined_call_operand.vmem [shape: f32[256,35], index: 0, kind: input, shape index: {}]
  %s1 = inlined_call_operand.vmem [shape: f32[3,256], index: 1, kind: input, shape index: {}]
  %s2 = inlined_call_operand.vmem [shape: bf16[35,128], index: 2, kind: input, shape index: {}]
  %s3 = inlined_call_operand.vmem [shape: bf16[35,128], index: 3, kind: input, shape index: {}]
  %s4 = inlined_call_operand.vmem [shape: bf16[640,128], index: 4, kind: input, shape index: {}]
  %s5 = inlined_call_operand.vmem [shape: f32[6,128], index: 5, kind: input, shape index: {}]
  %s6 = inlined_call_operand.vmem [shape: bf16[128,8], index: 6, kind: input, shape index: {}]
  %s7 = inlined_call_operand.vmem [shape: f32[1,8], index: 7, kind: input, shape index: {}]
  %s8 = inlined_call_operand.hbm [shape: f32[3,256], index: 8, kind: output, shape index: {}]
  %s9 = sld [smem:[#allocation0]]
  $region65: #{tpu_custom_call.1} parent=0
    _
  %s11 = ssub.s32 1, %s9
  %s12 = scalar_select 0, %s11, %s9
  $region1: #{tpu_custom_call.1} parent=0
    #allocation2 [shape = 'u8[4096]{0}', space=vmem, size = 0x1000, scoped, tag = 'output window, operand 0']
    #allocation3 [shape = 's32[2]{0}', space=sflag, size = 0x8, scoped, tag = 'scoped memory for tpu_custom_call.1']
    %13 = vsyncpa [#allocation3], 0
    %s14 = scalar_lea.sflag [#allocation3], 1
    %15 = vsyncpa %s14, 0
    loop: start=0, step=1, limit=4
    $region2: #{tpu_custom_call.1} parent=1 // loop_pre_header
      _
    $region3: #{tpu_custom_call.1} parent=1 // loop_header
      %s17 = sphi 0, %s21
      %p18 = scmp.ge.s32.totalorder %s17, 4
      %s27 = sphi 0, %s29
      %s30 = sphi 0, %s27
      %s31 = sphi 0, %s30
      %s47 = sphi 0, %s31
      %s53 = sphi 0, %s55
      %s56 = sphi 0, %s53
      %s57 = sphi 0, %s56
      %s73 = sphi 0, %s57
      %s77 = sphi 0, %s77
      %s79 = sphi 0, %s77
      %s80 = sphi 0, %s79
      %s94 = sphi 0, %s80
      %s98 = sphi 0, %s98
      %s100 = sphi 0, %s98
      %s101 = sphi 0, %s100
      %s115 = sphi 0, %s101
      %s119 = sphi 0, %s119
      %s121 = sphi 0, %s119
      %s122 = sphi 0, %s121
      %s136 = sphi 0, %s122
      %s140 = sphi 0, %s140
      %s142 = sphi 0, %s140
      %s143 = sphi 0, %s142
      %s157 = sphi 0, %s143
      %s161 = sphi 0, %s161
      %s163 = sphi 0, %s161
      %s164 = sphi 0, %s163
      %s178 = sphi 0, %s164
      %s182 = sphi 0, %s182
      %s184 = sphi 0, %s182
      %s185 = sphi 0, %s184
      %s199 = sphi 0, %s185
      %s205 = sphi 0, %s207
      %s208 = sphi 0, %s205
      %s209 = sphi 0, %s208
      %s225 = sphi 0, %s209
    $region4: #{tpu_custom_call.1} parent=1 // loop_header_branch
      %20 = sbr.rel (%p18) target = $region8
    $region5: #{tpu_custom_call.1} parent=1 // loop_body
      %s22 = ssub.s32 %s17, 1
      %s23 = ssub.s32 %s17, 2
      %s24 = sadd.s32 %s17, 1
      %s25 = ssub.s32 %s17, %s24
      %p26 = scmp.eq.s32.totalorder %s25, 0
      %s28 = sadd.s32 %s27, 1
      %s29 = scalar_select %p26, %s27, %s28
      %p32 = pneg %p26
      %p33 = scmp.eq.s32.totalorder %s17, 1
      %p34 = por %p32, %p33
      %p35 = scmp.ne.s32.totalorder %s27, %s30
      %p36 = scmp.eq.s32.totalorder %s17, 0
      %p37 = por %p35, %p36
      %p38 = scmp.ne.s32.totalorder %s27, %s30
      %p39 = scmp.eq.s32.totalorder %s22, 1
      %p40 = por %p38, %p39
      %p41 = scmp.ne.s32.totalorder %s30, %s31
      %p42 = scmp.eq.s32.totalorder %s22, 0
      %p43 = por %p41, %p42
      %p44 = scmp.ne.s32.totalorder %s30, %s31
      %p45 = scmp.eq.s32.totalorder %s23, 1
      %p46 = por %p44, %p45
      %p48 = scmp.ne.s32.totalorder %s31, %s47
      %p49 = scmp.eq.s32.totalorder %s23, 0
      %p50 = por %p48, %p49
      %s51 = ssub.s32 %s17, %s24
      %p52 = scmp.eq.s32.totalorder %s51, 0
      %s54 = sadd.s32 %s53, 1
      %s55 = scalar_select %p52, %s53, %s54
      %p58 = pneg %p52
      %p59 = scmp.eq.s32.totalorder %s17, 1
      %p60 = por %p58, %p59
      %p61 = scmp.ne.s32.totalorder %s53, %s56
      %p62 = scmp.eq.s32.totalorder %s17, 0
      %p63 = por %p61, %p62
      %p64 = scmp.ne.s32.totalorder %s53, %s56
      %p65 = scmp.eq.s32.totalorder %s22, 1
      %p66 = por %p64, %p65
      %p67 = scmp.ne.s32.totalorder %s56, %s57
      %p68 = scmp.eq.s32.totalorder %s22, 0
      %p69 = por %p67, %p68
      %p70 = scmp.ne.s32.totalorder %s56, %s57
      %p71 = scmp.eq.s32.totalorder %s23, 1
      %p72 = por %p70, %p71
      %p74 = scmp.ne.s32.totalorder %s57, %s73
      %p75 = scmp.eq.s32.totalorder %s23, 0
      %p76 = por %p74, %p75
      %s78 = sadd.s32 %s77, 1
      %p81 = scmp.eq.s32.totalorder %s17, 1
      %p82 = scmp.ne.s32.totalorder %s77, %s79
      %p83 = scmp.eq.s32.totalorder %s17, 0
      %p84 = por %p82, %p83
      %p85 = scmp.ne.s32.totalorder %s77, %s79
      %p86 = scmp.eq.s32.totalorder %s22, 1
      %p87 = por %p85, %p86
      %p88 = scmp.ne.s32.totalorder %s79, %s80
      %p89 = scmp.eq.s32.totalorder %s22, 0
      %p90 = por %p88, %p89
      %p91 = scmp.ne.s32.totalorder %s79, %s80
      %p92 = scmp.eq.s32.totalorder %s23, 1
      %p93 = por %p91, %p92
      %p95 = scmp.ne.s32.totalorder %s80, %s94
      %p96 = scmp.eq.s32.totalorder %s23, 0
      %p97 = por %p95, %p96
      %s99 = sadd.s32 %s98, 1
      %p102 = scmp.eq.s32.totalorder %s17, 1
      %p103 = scmp.ne.s32.totalorder %s98, %s100
      %p104 = scmp.eq.s32.totalorder %s17, 0
      %p105 = por %p103, %p104
      %p106 = scmp.ne.s32.totalorder %s98, %s100
      %p107 = scmp.eq.s32.totalorder %s22, 1
      %p108 = por %p106, %p107
      %p109 = scmp.ne.s32.totalorder %s100, %s101
      %p110 = scmp.eq.s32.totalorder %s22, 0
      %p111 = por %p109, %p110
      %p112 = scmp.ne.s32.totalorder %s100, %s101
      %p113 = scmp.eq.s32.totalorder %s23, 1
      %p114 = por %p112, %p113
      %p116 = scmp.ne.s32.totalorder %s101, %s115
      %p117 = scmp.eq.s32.totalorder %s23, 0
      %p118 = por %p116, %p117
      %s120 = sadd.s32 %s119, 1
      %p123 = scmp.eq.s32.totalorder %s17, 1
      %p124 = scmp.ne.s32.totalorder %s119, %s121
      %p125 = scmp.eq.s32.totalorder %s17, 0
      %p126 = por %p124, %p125
      %p127 = scmp.ne.s32.totalorder %s119, %s121
      %p128 = scmp.eq.s32.totalorder %s22, 1
      %p129 = por %p127, %p128
      %p130 = scmp.ne.s32.totalorder %s121, %s122
      %p131 = scmp.eq.s32.totalorder %s22, 0
      %p132 = por %p130, %p131
      %p133 = scmp.ne.s32.totalorder %s121, %s122
      %p134 = scmp.eq.s32.totalorder %s23, 1
      %p135 = por %p133, %p134
      %p137 = scmp.ne.s32.totalorder %s122, %s136
      %p138 = scmp.eq.s32.totalorder %s23, 0
      %p139 = por %p137, %p138
      %s141 = sadd.s32 %s140, 1
      %p144 = scmp.eq.s32.totalorder %s17, 1
      %p145 = scmp.ne.s32.totalorder %s140, %s142
      %p146 = scmp.eq.s32.totalorder %s17, 0
      %p147 = por %p145, %p146
      %p148 = scmp.ne.s32.totalorder %s140, %s142
      %p149 = scmp.eq.s32.totalorder %s22, 1
      %p150 = por %p148, %p149
      %p151 = scmp.ne.s32.totalorder %s142, %s143
      %p152 = scmp.eq.s32.totalorder %s22, 0
      %p153 = por %p151, %p152
      %p154 = scmp.ne.s32.totalorder %s142, %s143
      %p155 = scmp.eq.s32.totalorder %s23, 1
      %p156 = por %p154, %p155
      %p158 = scmp.ne.s32.totalorder %s143, %s157
      %p159 = scmp.eq.s32.totalorder %s23, 0
      %p160 = por %p158, %p159
      %s162 = sadd.s32 %s161, 1
      %p165 = scmp.eq.s32.totalorder %s17, 1
      %p166 = scmp.ne.s32.totalorder %s161, %s163
      %p167 = scmp.eq.s32.totalorder %s17, 0
      %p168 = por %p166, %p167
      %p169 = scmp.ne.s32.totalorder %s161, %s163
      %p170 = scmp.eq.s32.totalorder %s22, 1
      %p171 = por %p169, %p170
      %p172 = scmp.ne.s32.totalorder %s163, %s164
      %p173 = scmp.eq.s32.totalorder %s22, 0
      %p174 = por %p172, %p173
      %p175 = scmp.ne.s32.totalorder %s163, %s164
      %p176 = scmp.eq.s32.totalorder %s23, 1
      %p177 = por %p175, %p176
      %p179 = scmp.ne.s32.totalorder %s164, %s178
      %p180 = scmp.eq.s32.totalorder %s23, 0
      %p181 = por %p179, %p180
      %s183 = sadd.s32 %s182, 1
      %p186 = scmp.eq.s32.totalorder %s17, 1
      %p187 = scmp.ne.s32.totalorder %s182, %s184
      %p188 = scmp.eq.s32.totalorder %s17, 0
      %p189 = por %p187, %p188
      %p190 = scmp.ne.s32.totalorder %s182, %s184
      %p191 = scmp.eq.s32.totalorder %s22, 1
      %p192 = por %p190, %p191
      %p193 = scmp.ne.s32.totalorder %s184, %s185
      %p194 = scmp.eq.s32.totalorder %s22, 0
      %p195 = por %p193, %p194
      %p196 = scmp.ne.s32.totalorder %s184, %s185
      %p197 = scmp.eq.s32.totalorder %s23, 1
      %p198 = por %p196, %p197
      %p200 = scmp.ne.s32.totalorder %s185, %s199
      %p201 = scmp.eq.s32.totalorder %s23, 0
      %p202 = por %p200, %p201
      %s203 = ssub.s32 %s17, %s24
      %p204 = scmp.eq.s32.totalorder %s203, 0
      %s206 = sadd.s32 %s205, 1
      %s207 = scalar_select %p204, %s205, %s206
      %p210 = pneg %p204
      %p211 = scmp.eq.s32.totalorder %s17, 1
      %p212 = por %p210, %p211
      %p213 = scmp.ne.s32.totalorder %s205, %s208
      %p214 = scmp.eq.s32.totalorder %s17, 0
      %p215 = por %p213, %p214
      %p216 = scmp.ne.s32.totalorder %s205, %s208
      %p217 = scmp.eq.s32.totalorder %s22, 1
      %p218 = por %p216, %p217
      %p219 = scmp.ne.s32.totalorder %s208, %s209
      %p220 = scmp.eq.s32.totalorder %s22, 0
      %p221 = por %p219, %p220
      %p222 = scmp.ne.s32.totalorder %s208, %s209
      %p223 = scmp.eq.s32.totalorder %s23, 1
      %p224 = por %p222, %p223
      %p226 = scmp.ne.s32.totalorder %s209, %s225
      %p227 = scmp.eq.s32.totalorder %s23, 0
      %p228 = por %p226, %p227
      %p229 = scmp.le.s32.totalorder 1, %s17
      %p230 = scmp.lt.s32.totalorder %s17, 3
      %p231 = pnand %p229, %p230
      %p232 = pneg %p231
      // Predicated region
      $region9: #{tpu_custom_call.1} parent=5 // pred_check
        _
      $region10: #{tpu_custom_call.1} parent=5 // pred_check_branch
        %234 = sbr.rel (%p231) target = $region12
      $region11: #{tpu_custom_call.1} parent=5 // pred_region
        %s235 = ssub.s32 %s17, 1
        // Predicated region
        $region13: #{tpu_custom_call.1} parent=11 // pred_check
          %p236 = pneg %p90
        $region14: #{tpu_custom_call.1} parent=11 // pred_check_branch
          %238 = sbr.rel (%p236) target = $region16
        $region15: #{tpu_custom_call.1} parent=11 // pred_region
          _
        $region16: #{tpu_custom_call.1} parent=11 // pred_fallthru
          _
        // Predicated region
        $region17: #{tpu_custom_call.1} parent=11 // pred_check
          %p239 = pneg %p111
        $region18: #{tpu_custom_call.1} parent=11 // pred_check_branch
          %241 = sbr.rel (%p239) target = $region20
        $region19: #{tpu_custom_call.1} parent=11 // pred_region
          _
        $region20: #{tpu_custom_call.1} parent=11 // pred_fallthru
          _
        // Predicated region
        $region21: #{tpu_custom_call.1} parent=11 // pred_check
          %p242 = pneg %p132
        $region22: #{tpu_custom_call.1} parent=11 // pred_check_branch
          %244 = sbr.rel (%p242) target = $region24
        $region23: #{tpu_custom_call.1} parent=11 // pred_region
          _
        $region24: #{tpu_custom_call.1} parent=11 // pred_fallthru
          _
        // Predicated region
        $region25: #{tpu_custom_call.1} parent=11 // pred_check
          %p245 = pneg %p153
        $region26: #{tpu_custom_call.1} parent=11 // pred_check_branch
          %247 = sbr.rel (%p245) target = $region28
        $region27: #{tpu_custom_call.1} parent=11 // pred_region
          _
        $region28: #{tpu_custom_call.1} parent=11 // pred_fallthru
          _
        // Predicated region
        $region29: #{tpu_custom_call.1} parent=11 // pred_check
          %p248 = pneg %p174
        $region30: #{tpu_custom_call.1} parent=11 // pred_check_branch
          %250 = sbr.rel (%p248) target = $region32
        $region31: #{tpu_custom_call.1} parent=11 // pred_region
          _
        $region32: #{tpu_custom_call.1} parent=11 // pred_fallthru
          _
        // Predicated region
        $region33: #{tpu_custom_call.1} parent=11 // pred_check
          %p251 = pneg %p195
        $region34: #{tpu_custom_call.1} parent=11 // pred_check_branch
          %253 = sbr.rel (%p251) target = $region36
        $region35: #{tpu_custom_call.1} parent=11 // pred_region
          _
        $region36: #{tpu_custom_call.1} parent=11 // pred_fallthru
          _
      $region12: #{tpu_custom_call.1} parent=5 // pred_fallthru
        _
      %p254 = scmp.lt.s32.totalorder %s17, 2
      // Predicated region
      $region37: #{tpu_custom_call.1} parent=5 // pred_check
        %p255 = pneg %p254
      $region38: #{tpu_custom_call.1} parent=5 // pred_check_branch
        %257 = sbr.rel (%p255) target = $region40
      $region39: #{tpu_custom_call.1} parent=5 // pred_region
        // Predicated region
        $region41: #{tpu_custom_call.1} parent=39 // pred_check
          %p258 = pneg %p37
        $region42: #{tpu_custom_call.1} parent=39 // pred_check_branch
          %260 = sbr.rel (%p258) target = $region44
        $region43: #{tpu_custom_call.1} parent=39 // pred_region
          %s261 = smul.u32 16, %s17
          %p262 = scmp.lt.s32.totalorder %s261, 31
          %s263 = scalar_select %p262, %s261, 31
          %s264 = smul.addr %s263, 8
          %s265 = scalar_lea.vmem %s0, %s264
          %s266 = smul.u32 16, %s17
        $region44: #{tpu_custom_call.1} parent=39 // pred_fallthru
          _
        // Predicated region
        $region45: #{tpu_custom_call.1} parent=39 // pred_check
          %p267 = pneg %p63
        $region46: #{tpu_custom_call.1} parent=39 // pred_check_branch
          %269 = sbr.rel (%p267) target = $region48
        $region47: #{tpu_custom_call.1} parent=39 // pred_region
          %p270 = scmp.lt.s32.totalorder %s17, 1
          %s271 = scalar_select %p270, %s17, 1
          %s272 = smul.addr %s271, 4
          %s273 = scalar_lea.vmem %s1, %s272
        $region48: #{tpu_custom_call.1} parent=39 // pred_fallthru
          _
      $region40: #{tpu_custom_call.1} parent=5 // pred_fallthru
        _
      %p274 = scmp.le.s32.totalorder 1, %s17
      %p275 = scmp.lt.s32.totalorder %s17, 3
      %p276 = pnand %p274, %p275
      %p277 = pneg %p276
      // Predicated region
      $region49: #{tpu_custom_call.1} parent=5 // pred_check
        _
      $region50: #{tpu_custom_call.1} parent=5 // pred_check_branch
        %279 = sbr.rel (%p276) target = $region52
      $region51: #{tpu_custom_call.1} parent=5 // pred_region
        %s280 = ssub.s32 %s17, 1
        %s281 = smul.u32 16, %s22
        %p282 = scmp.lt.s32.totalorder %s281, 31
        %s283 = scalar_select %p282, %s281, 31
        %s284 = smul.addr %s283, 8
        %s285 = scalar_lea.vmem %s0, %s284
        %p286 = pneg %p43
        %p287 = pneg %p40
        %p288 = scmp.lt.s32.totalorder %s22, 1
        %s289 = scalar_select %p288, %s22, 1
        %s290 = smul.addr %s289, 4
        %s291 = scalar_lea.vmem %s1, %s290
        %p292 = pneg %p69
        %p293 = pneg %p66
        %p294 = pneg %p90
        %p295 = pneg %p87
        %p296 = pneg %p111
        %p297 = pneg %p108
        %p298 = pneg %p132
        %p299 = pneg %p129
        %p300 = pneg %p153
        %p301 = pneg %p150
        %p302 = pneg %p174
        %p303 = pneg %p171
        %p304 = pneg %p195
        %p305 = pneg %p192
        %p306 = pneg %p221
        %p307 = pneg %p218
        %s308 = sand.u32 %s208, 1
        %s309 = scalar_lea.sflag [#allocation3], %s308
        %s310 = sand.u32 %s208, 1
        %s311 = smul.addr %s310, 4
        %s312 = scalar_lea.vmem [#allocation2], %s311
        %s313 = smul.u32 16, %s22
        %p314 = scmp.lt.s32.totalorder %s313, 31
        %s315 = scalar_select %p314, %s313, 31
        %s316 = smul.addr %s315, 8
        %s317 = scalar_lea.vmem %s0, %s316
        %s318 = smul.u32 16, %s22
        %p319 = scmp.lt.s32.totalorder %s22, 1
        %s320 = scalar_select %p319, %s22, 1
        %s321 = smul.addr %s320, 4
        %s322 = scalar_lea.vmem %s1, %s321
        %v324 = vld [vmem:[%s317] sm:$0xff]
        %v325 = vld [vmem:[%s317 + $0x8] sm:$0xff]
        %v326 = vld [vmem:[%s317 + $0x10] sm:$0xff]
        %v327 = vld [vmem:[%s317 + $0x18] sm:$0xff]
        %v328 = vld [vmem:[%s317 + $0x20] sm:$0xff]
        %v329 = vld [vmem:[%s317 + $0x28] sm:$0xff]
        %v330 = vld [vmem:[%s317 + $0x30] sm:$0xff]
        %v331 = vld [vmem:[%s317 + $0x38] sm:$0xff]
        %v332 = vld [vmem:[%s317 + $0x40] sm:$0xff]
        %v333 = vld [vmem:[%s317 + $0x48] sm:$0xff]
        %v334 = vld [vmem:[%s317 + $0x50] sm:$0xff]
        %v335 = vld [vmem:[%s317 + $0x58] sm:$0xff]
        %v336 = vld [vmem:[%s317 + $0x60] sm:$0xff]
        %v337 = vld [vmem:[%s317 + $0x68] sm:$0xff]
        %v338 = vld [vmem:[%s317 + $0x70] sm:$0xff]
        %v339 = vld [vmem:[%s317 + $0x78] sm:$0xff]
        %v340 = vpack.c.bf16 %v325, %v324
        %v341 = vpack.c.bf16 %v327, %v326
        %v342 = vpack.c.bf16 %v329, %v328
        %v343 = vpack.c.bf16 %v331, %v330
        %v344 = vpack.c.bf16 %v333, %v332
        %v345 = vpack.c.bf16 %v335, %v334
        %v346 = vpack.c.bf16 %v337, %v336
        %v347 = vpack.c.bf16 %v339, %v338
        %v348 = vld [vmem:[%s2] sm:$0xf]
        %v349 = vld [vmem:[%s2 + $0x4] sm:$0xf]
        %v350 = vld [vmem:[%s2 + $0x8] sm:$0xf]
        %v351 = vld [vmem:[%s2 + $0xc] sm:$0xf]
        %v352 = vld [vmem:[%s2 + $0x10] sm:$0x3]
        %v353 = vld [vmem:[%s5] sm:$0x1]
        %v354 = vperm.slane %v353, 0
        %v360 = vunpack.c.l.b16 %v348
        %v361 = vunpack.c.l.b16 %v349
        %v362 = vunpack.c.l.b16 %v350
        %v363 = vunpack.c.l.b16 %v351
        %v364 = vunpack.c.l.b16 %v352
        %v365 = vpack.c.b16 %v361, %v360
        %v366 = vpack.c.b16 %v363, %v362
        %v367 = vpack.c.b16 %v364, %v364
        %vm370 = vcmask 285696
        %v372 = vsel %vm370, %v340, 0
        %v375 = vsel %vm370, %v341, 0
        %v378 = vsel %vm370, %v342, 0
        %v381 = vsel %vm370, %v343, 0
        %v384 = vsel %vm370, %v344, 0
        %v387 = vsel %vm370, %v345, 0
        %v390 = vsel %vm370, %v346, 0
        %v393 = vsel %vm370, %v347, 0
        %vm395 = vcmask 1040384
        %vm396 = vcmask 1041408
        %v397 = vsel %vm395, 4294967295, 65535
        %v398 = vsel %vm396, %v397, 0
        %v400 = vand.u32 %v367, %v398
        %402 = vmatpush.bf16.msra.mxu0 0
        %403 = vmatpush.bf16.msra.mxu0 0
        %404 = vmatpush.bf16.msra.mxu0 0
        %405 = vmatpush.bf16.msra.mxu0 0
        %406 = vmatpush.bf16.msra.mxu0 0
        %407 = vmatpush.bf16.msra.mxu0 %v400
        %408 = vmatpush.bf16.msra.mxu0 %v366
        %409 = vmatpush.bf16.msra.mxu0 %v365
        %410 = vmatmul.bf16.gmra.mxu0 %v372
        %v411 = vpop.f32.mrf.mxu0
        %v412 = vadd.f32 %v354, %v411
        %v413 = vpop.f32.mrf.mxu0
        %v414 = vadd.f32 %v354, %v413
        %415 = vmatmul.bf16.gmra.mxu0 %v375
        %v416 = vpop.f32.mrf.mxu0
        %v417 = vadd.f32 %v354, %v416
        %v418 = vpop.f32.mrf.mxu0
        %v419 = vadd.f32 %v354, %v418
        %420 = vmatmul.bf16.gmra.mxu0 %v378
        %v421 = vpop.f32.mrf.mxu0
        %v422 = vadd.f32 %v354, %v421
        %v423 = vpop.f32.mrf.mxu0
        %v424 = vadd.f32 %v354, %v423
        %425 = vmatmul.bf16.gmra.mxu0 %v381
        %v426 = vpop.f32.mrf.mxu0
        %v427 = vadd.f32 %v354, %v426
        %v428 = vpop.f32.mrf.mxu0
        %v429 = vadd.f32 %v354, %v428
        %430 = vmatmul.bf16.gmra.mxu0 %v384
        %v431 = vpop.f32.mrf.mxu0
        %v432 = vadd.f32 %v354, %v431
        %v433 = vpop.f32.mrf.mxu0
        %v434 = vadd.f32 %v354, %v433
        %435 = vmatmul.bf16.gmra.mxu0 %v387
        %v436 = vpop.f32.mrf.mxu0
        %v437 = vadd.f32 %v354, %v436
        %v438 = vpop.f32.mrf.mxu0
        %v439 = vadd.f32 %v354, %v438
        %440 = vmatmul.bf16.gmra.mxu0 %v390
        %v441 = vpop.f32.mrf.mxu0
        %v442 = vadd.f32 %v354, %v441
        %v443 = vpop.f32.mrf.mxu0
        %v444 = vadd.f32 %v354, %v443
        %445 = vmatmul.bf16.gmra.mxu0 %v393
        %v446 = vpop.f32.mrf.mxu0
        %v447 = vadd.f32 %v354, %v446
        %v448 = vpop.f32.mrf.mxu0
        %v449 = vadd.f32 %v354, %v448
        %450 = vdwg.mxu0
        %v451 = vpack.c.bf16 %v412, %v412
        %v452 = vpack.c.bf16 %v414, %v414
        %v453 = vpack.c.bf16 %v417, %v417
        %v454 = vpack.c.bf16 %v419, %v419
        %v455 = vpack.c.bf16 %v422, %v422
        %v456 = vpack.c.bf16 %v424, %v424
        %v457 = vpack.c.bf16 %v427, %v427
        %v458 = vpack.c.bf16 %v429, %v429
        %v459 = vpack.c.bf16 %v432, %v432
        %v460 = vpack.c.bf16 %v434, %v434
        %v461 = vpack.c.bf16 %v437, %v437
        %v462 = vpack.c.bf16 %v439, %v439
        %v463 = vpack.c.bf16 %v442, %v442
        %v464 = vpack.c.bf16 %v444, %v444
        %v465 = vpack.c.bf16 %v447, %v447
        %v466 = vpack.c.bf16 %v449, %v449
        %v467 = vunpack.c.l.bf16 %v451
        %v468 = vunpack.c.l.bf16 %v452
        %v469 = vunpack.c.l.bf16 %v453
        %v470 = vunpack.c.l.bf16 %v454
        %v471 = vunpack.c.l.bf16 %v455
        %v472 = vunpack.c.l.bf16 %v456
        %v473 = vunpack.c.l.bf16 %v457
        %v474 = vunpack.c.l.bf16 %v458
        %v475 = vunpack.c.l.bf16 %v459
        %v476 = vunpack.c.l.bf16 %v460
        %v477 = vunpack.c.l.bf16 %v461
        %v478 = vunpack.c.l.bf16 %v462
        %v479 = vunpack.c.l.bf16 %v463
        %v480 = vunpack.c.l.bf16 %v464
        %v481 = vunpack.c.l.bf16 %v465
        %v482 = vunpack.c.l.bf16 %v466
        %v483 = vmax.f32 %v467, 0.0
        %v484 = vmax.f32 %v468, 0.0
        %v485 = vmax.f32 %v469, 0.0
        %v486 = vmax.f32 %v470, 0.0
        %v487 = vmax.f32 %v471, 0.0
        %v488 = vmax.f32 %v472, 0.0
        %v489 = vmax.f32 %v473, 0.0
        %v490 = vmax.f32 %v474, 0.0
        %v491 = vmax.f32 %v475, 0.0
        %v492 = vmax.f32 %v476, 0.0
        %v493 = vmax.f32 %v477, 0.0
        %v494 = vmax.f32 %v478, 0.0
        %v495 = vmax.f32 %v479, 0.0
        %v496 = vmax.f32 %v480, 0.0
        %v497 = vmax.f32 %v481, 0.0
        %v498 = vmax.f32 %v482, 0.0
        %v499 = vpack.c.bf16 %v484, %v483
        %v500 = vpack.c.bf16 %v486, %v485
        %v501 = vpack.c.bf16 %v488, %v487
        %v502 = vpack.c.bf16 %v490, %v489
        %v503 = vpack.c.bf16 %v492, %v491
        %v504 = vpack.c.bf16 %v494, %v493
        %v505 = vpack.c.bf16 %v496, %v495
        %v506 = vpack.c.bf16 %v498, %v497
        %v507 = vld [vmem:[%s4] sm:$0xf]
        %v508 = vld [vmem:[%s4 + $0x4] sm:$0xf]
        %v509 = vld [vmem:[%s4 + $0x8] sm:$0xf]
        %v510 = vld [vmem:[%s4 + $0xc] sm:$0xf]
        %v511 = vld [vmem:[%s4 + $0x10] sm:$0xf]
        %v512 = vld [vmem:[%s4 + $0x14] sm:$0xf]
        %v513 = vld [vmem:[%s4 + $0x18] sm:$0xf]
        %v514 = vld [vmem:[%s4 + $0x1c] sm:$0xf]
        %v515 = vld [vmem:[%s4 + $0x20] sm:$0xf]
        %v516 = vld [vmem:[%s4 + $0x24] sm:$0xf]
        %v517 = vld [vmem:[%s4 + $0x28] sm:$0xf]
        %v518 = vld [vmem:[%s4 + $0x2c] sm:$0xf]
        %v519 = vld [vmem:[%s4 + $0x30] sm:$0xf]
        %v520 = vld [vmem:[%s4 + $0x34] sm:$0xf]
        %v521 = vld [vmem:[%s4 + $0x38] sm:$0xf]
        %v522 = vld [vmem:[%s4 + $0x3c] sm:$0xf]
        %v523 = vld [vmem:[%s5 + $0x1] sm:$0x1]
        %v524 = vperm.slane %v523, 0
        %v541 = vunpack.c.l.b16 %v507
        %v542 = vunpack.c.l.b16 %v508
        %v543 = vunpack.c.l.b16 %v509
        %v544 = vunpack.c.l.b16 %v510
        %v545 = vunpack.c.l.b16 %v511
        %v546 = vunpack.c.l.b16 %v512
        %v547 = vunpack.c.l.b16 %v513
        %v548 = vunpack.c.l.b16 %v514
        %v549 = vunpack.c.l.b16 %v515
        %v550 = vunpack.c.l.b16 %v516
        %v551 = vunpack.c.l.b16 %v517
        %v552 = vunpack.c.l.b16 %v518
        %v553 = vunpack.c.l.b16 %v519
        %v554 = vunpack.c.l.b16 %v520
        %v555 = vunpack.c.l.b16 %v521
        %v556 = vunpack.c.l.b16 %v522
        %v557 = vpack.c.b16 %v542, %v541
        %v558 = vpack.c.b16 %v544, %v543
        %v559 = vpack.c.b16 %v546, %v545
        %v560 = vpack.c.b16 %v548, %v547
        %v561 = vpack.c.b16 %v550, %v549
        %v562 = vpack.c.b16 %v552, %v551
        %v563 = vpack.c.b16 %v554, %v553
        %v564 = vpack.c.b16 %v556, %v555
        %573 = vmatpush.bf16.msra.mxu0 %v564
        %574 = vmatpush.bf16.msra.mxu0 %v563
        %575 = vmatpush.bf16.msra.mxu0 %v562
        %576 = vmatpush.bf16.msra.mxu0 %v561
        %577 = vmatpush.bf16.msra.mxu0 %v560
        %578 = vmatpush.bf16.msra.mxu0 %v559
        %579 = vmatpush.bf16.msra.mxu0 %v558
        %580 = vmatpush.bf16.msra.mxu0 %v557
        %581 = vmatmul.bf16.gmra.mxu0 %v499
        %v582 = vpop.f32.mrf.mxu0
        %v583 = vadd.f32 %v524, %v582
        %v584 = vpop.f32.mrf.mxu0
        %v585 = vadd.f32 %v524, %v584
        %586 = vmatmul.bf16.gmra.mxu0 %v500
        %v587 = vpop.f32.mrf.mxu0
        %v588 = vadd.f32 %v524, %v587
        %v589 = vpop.f32.mrf.mxu0
        %v590 = vadd.f32 %v524, %v589
        %591 = vmatmul.bf16.gmra.mxu0 %v501
        %v592 = vpop.f32.mrf.mxu0
        %v593 = vadd.f32 %v524, %v592
        %v594 = vpop.f32.mrf.mxu0
        %v595 = vadd.f32 %v524, %v594
        %596 = vmatmul.bf16.gmra.mxu0 %v502
        %v597 = vpop.f32.mrf.mxu0
        %v598 = vadd.f32 %v524, %v597
        %v599 = vpop.f32.mrf.mxu0
        %v600 = vadd.f32 %v524, %v599
        %601 = vmatmul.bf16.gmra.mxu0 %v503
        %v602 = vpop.f32.mrf.mxu0
        %v603 = vadd.f32 %v524, %v602
        %v604 = vpop.f32.mrf.mxu0
        %v605 = vadd.f32 %v524, %v604
        %606 = vmatmul.bf16.gmra.mxu0 %v504
        %v607 = vpop.f32.mrf.mxu0
        %v608 = vadd.f32 %v524, %v607
        %v609 = vpop.f32.mrf.mxu0
        %v610 = vadd.f32 %v524, %v609
        %611 = vmatmul.bf16.gmra.mxu0 %v505
        %v612 = vpop.f32.mrf.mxu0
        %v613 = vadd.f32 %v524, %v612
        %v614 = vpop.f32.mrf.mxu0
        %v615 = vadd.f32 %v524, %v614
        %616 = vmatmul.bf16.gmra.mxu0 %v506
        %v617 = vpop.f32.mrf.mxu0
        %v618 = vadd.f32 %v524, %v617
        %v619 = vpop.f32.mrf.mxu0
        %v620 = vadd.f32 %v524, %v619
        %621 = vdwg.mxu0
        %v622 = vpack.c.bf16 %v583, %v583
        %v623 = vpack.c.bf16 %v585, %v585
        %v624 = vpack.c.bf16 %v588, %v588
        %v625 = vpack.c.bf16 %v590, %v590
        %v626 = vpack.c.bf16 %v593, %v593
        %v627 = vpack.c.bf16 %v595, %v595
        %v628 = vpack.c.bf16 %v598, %v598
        %v629 = vpack.c.bf16 %v600, %v600
        %v630 = vpack.c.bf16 %v603, %v603
        %v631 = vpack.c.bf16 %v605, %v605
        %v632 = vpack.c.bf16 %v608, %v608
        %v633 = vpack.c.bf16 %v610, %v610
        %v634 = vpack.c.bf16 %v613, %v613
        %v635 = vpack.c.bf16 %v615, %v615
        %v636 = vpack.c.bf16 %v618, %v618
        %v637 = vpack.c.bf16 %v620, %v620
        %v638 = vunpack.c.l.bf16 %v622
        %v639 = vunpack.c.l.bf16 %v623
        %v640 = vunpack.c.l.bf16 %v624
        %v641 = vunpack.c.l.bf16 %v625
        %v642 = vunpack.c.l.bf16 %v626
        %v643 = vunpack.c.l.bf16 %v627
        %v644 = vunpack.c.l.bf16 %v628
        %v645 = vunpack.c.l.bf16 %v629
        %v646 = vunpack.c.l.bf16 %v630
        %v647 = vunpack.c.l.bf16 %v631
        %v648 = vunpack.c.l.bf16 %v632
        %v649 = vunpack.c.l.bf16 %v633
        %v650 = vunpack.c.l.bf16 %v634
        %v651 = vunpack.c.l.bf16 %v635
        %v652 = vunpack.c.l.bf16 %v636
        %v653 = vunpack.c.l.bf16 %v637
        %v654 = vmax.f32 %v638, 0.0
        %v655 = vmax.f32 %v639, 0.0
        %v656 = vmax.f32 %v640, 0.0
        %v657 = vmax.f32 %v641, 0.0
        %v658 = vmax.f32 %v642, 0.0
        %v659 = vmax.f32 %v643, 0.0
        %v660 = vmax.f32 %v644, 0.0
        %v661 = vmax.f32 %v645, 0.0
        %v662 = vmax.f32 %v646, 0.0
        %v663 = vmax.f32 %v647, 0.0
        %v664 = vmax.f32 %v648, 0.0
        %v665 = vmax.f32 %v649, 0.0
        %v666 = vmax.f32 %v650, 0.0
        %v667 = vmax.f32 %v651, 0.0
        %v668 = vmax.f32 %v652, 0.0
        %v669 = vmax.f32 %v653, 0.0
        %v670 = vpack.c.bf16 %v655, %v654
        %v671 = vpack.c.bf16 %v657, %v656
        %v672 = vpack.c.bf16 %v659, %v658
        %v673 = vpack.c.bf16 %v661, %v660
        %v674 = vpack.c.bf16 %v663, %v662
        %v675 = vpack.c.bf16 %v665, %v664
        %v676 = vpack.c.bf16 %v667, %v666
        %v677 = vpack.c.bf16 %v669, %v668
        %v678 = vld [vmem:[%s4 + $0x40] sm:$0xf]
        %v679 = vld [vmem:[%s4 + $0x44] sm:$0xf]
        %v680 = vld [vmem:[%s4 + $0x48] sm:$0xf]
        %v681 = vld [vmem:[%s4 + $0x4c] sm:$0xf]
        %v682 = vld [vmem:[%s4 + $0x50] sm:$0xf]
        %v683 = vld [vmem:[%s4 + $0x54] sm:$0xf]
        %v684 = vld [vmem:[%s4 + $0x58] sm:$0xf]
        %v685 = vld [vmem:[%s4 + $0x5c] sm:$0xf]
        %v686 = vld [vmem:[%s4 + $0x60] sm:$0xf]
        %v687 = vld [vmem:[%s4 + $0x64] sm:$0xf]
        %v688 = vld [vmem:[%s4 + $0x68] sm:$0xf]
        %v689 = vld [vmem:[%s4 + $0x6c] sm:$0xf]
        %v690 = vld [vmem:[%s4 + $0x70] sm:$0xf]
        %v691 = vld [vmem:[%s4 + $0x74] sm:$0xf]
        %v692 = vld [vmem:[%s4 + $0x78] sm:$0xf]
        %v693 = vld [vmem:[%s4 + $0x7c] sm:$0xf]
        %v694 = vld [vmem:[%s5 + $0x2] sm:$0x1]
        %v695 = vperm.slane %v694, 0
        %v712 = vunpack.c.l.b16 %v678
        %v713 = vunpack.c.l.b16 %v679
        %v714 = vunpack.c.l.b16 %v680
        %v715 = vunpack.c.l.b16 %v681
        %v716 = vunpack.c.l.b16 %v682
        %v717 = vunpack.c.l.b16 %v683
        %v718 = vunpack.c.l.b16 %v684
        %v719 = vunpack.c.l.b16 %v685
        %v720 = vunpack.c.l.b16 %v686
        %v721 = vunpack.c.l.b16 %v687
        %v722 = vunpack.c.l.b16 %v688
        %v723 = vunpack.c.l.b16 %v689
        %v724 = vunpack.c.l.b16 %v690
        %v725 = vunpack.c.l.b16 %v691
        %v726 = vunpack.c.l.b16 %v692
        %v727 = vunpack.c.l.b16 %v693
        %v728 = vpack.c.b16 %v713, %v712
        %v729 = vpack.c.b16 %v715, %v714
        %v730 = vpack.c.b16 %v717, %v716
        %v731 = vpack.c.b16 %v719, %v718
        %v732 = vpack.c.b16 %v721, %v720
        %v733 = vpack.c.b16 %v723, %v722
        %v734 = vpack.c.b16 %v725, %v724
        %v735 = vpack.c.b16 %v727, %v726
        %744 = vmatpush.bf16.msra.mxu0 %v735
        %745 = vmatpush.bf16.msra.mxu0 %v734
        %746 = vmatpush.bf16.msra.mxu0 %v733
        %747 = vmatpush.bf16.msra.mxu0 %v732
        %748 = vmatpush.bf16.msra.mxu0 %v731
        %749 = vmatpush.bf16.msra.mxu0 %v730
        %750 = vmatpush.bf16.msra.mxu0 %v729
        %751 = vmatpush.bf16.msra.mxu0 %v728
        %752 = vmatmul.bf16.gmra.mxu0 %v670
        %v753 = vpop.f32.mrf.mxu0
        %v754 = vadd.f32 %v695, %v753
        %v755 = vpop.f32.mrf.mxu0
        %v756 = vadd.f32 %v695, %v755
        %757 = vmatmul.bf16.gmra.mxu0 %v671
        %v758 = vpop.f32.mrf.mxu0
        %v759 = vadd.f32 %v695, %v758
        %v760 = vpop.f32.mrf.mxu0
        %v761 = vadd.f32 %v695, %v760
        %762 = vmatmul.bf16.gmra.mxu0 %v672
        %v763 = vpop.f32.mrf.mxu0
        %v764 = vadd.f32 %v695, %v763
        %v765 = vpop.f32.mrf.mxu0
        %v766 = vadd.f32 %v695, %v765
        %767 = vmatmul.bf16.gmra.mxu0 %v673
        %v768 = vpop.f32.mrf.mxu0
        %v769 = vadd.f32 %v695, %v768
        %v770 = vpop.f32.mrf.mxu0
        %v771 = vadd.f32 %v695, %v770
        %772 = vmatmul.bf16.gmra.mxu0 %v674
        %v773 = vpop.f32.mrf.mxu0
        %v774 = vadd.f32 %v695, %v773
        %v775 = vpop.f32.mrf.mxu0
        %v776 = vadd.f32 %v695, %v775
        %777 = vmatmul.bf16.gmra.mxu0 %v675
        %v778 = vpop.f32.mrf.mxu0
        %v779 = vadd.f32 %v695, %v778
        %v780 = vpop.f32.mrf.mxu0
        %v781 = vadd.f32 %v695, %v780
        %782 = vmatmul.bf16.gmra.mxu0 %v676
        %v783 = vpop.f32.mrf.mxu0
        %v784 = vadd.f32 %v695, %v783
        %v785 = vpop.f32.mrf.mxu0
        %v786 = vadd.f32 %v695, %v785
        %787 = vmatmul.bf16.gmra.mxu0 %v677
        %v788 = vpop.f32.mrf.mxu0
        %v789 = vadd.f32 %v695, %v788
        %v790 = vpop.f32.mrf.mxu0
        %v791 = vadd.f32 %v695, %v790
        %792 = vdwg.mxu0
        %v793 = vpack.c.bf16 %v754, %v754
        %v794 = vpack.c.bf16 %v756, %v756
        %v795 = vpack.c.bf16 %v759, %v759
        %v796 = vpack.c.bf16 %v761, %v761
        %v797 = vpack.c.bf16 %v764, %v764
        %v798 = vpack.c.bf16 %v766, %v766
        %v799 = vpack.c.bf16 %v769, %v769
        %v800 = vpack.c.bf16 %v771, %v771
        %v801 = vpack.c.bf16 %v774, %v774
        %v802 = vpack.c.bf16 %v776, %v776
        %v803 = vpack.c.bf16 %v779, %v779
        %v804 = vpack.c.bf16 %v781, %v781
        %v805 = vpack.c.bf16 %v784, %v784
        %v806 = vpack.c.bf16 %v786, %v786
        %v807 = vpack.c.bf16 %v789, %v789
        %v808 = vpack.c.bf16 %v791, %v791
        %v809 = vunpack.c.l.bf16 %v793
        %v810 = vunpack.c.l.bf16 %v794
        %v811 = vunpack.c.l.bf16 %v795
        %v812 = vunpack.c.l.bf16 %v796
        %v813 = vunpack.c.l.bf16 %v797
        %v814 = vunpack.c.l.bf16 %v798
        %v815 = vunpack.c.l.bf16 %v799
        %v816 = vunpack.c.l.bf16 %v800
        %v817 = vunpack.c.l.bf16 %v801
        %v818 = vunpack.c.l.bf16 %v802
        %v819 = vunpack.c.l.bf16 %v803
        %v820 = vunpack.c.l.bf16 %v804
        %v821 = vunpack.c.l.bf16 %v805
        %v822 = vunpack.c.l.bf16 %v806
        %v823 = vunpack.c.l.bf16 %v807
        %v824 = vunpack.c.l.bf16 %v808
        %v825 = vmax.f32 %v809, 0.0
        %v826 = vmax.f32 %v810, 0.0
        %v827 = vmax.f32 %v811, 0.0
        %v828 = vmax.f32 %v812, 0.0
        %v829 = vmax.f32 %v813, 0.0
        %v830 = vmax.f32 %v814, 0.0
        %v831 = vmax.f32 %v815, 0.0
        %v832 = vmax.f32 %v816, 0.0
        %v833 = vmax.f32 %v817, 0.0
        %v834 = vmax.f32 %v818, 0.0
        %v835 = vmax.f32 %v819, 0.0
        %v836 = vmax.f32 %v820, 0.0
        %v837 = vmax.f32 %v821, 0.0
        %v838 = vmax.f32 %v822, 0.0
        %v839 = vmax.f32 %v823, 0.0
        %v840 = vmax.f32 %v824, 0.0
        %v841 = vpack.c.bf16 %v826, %v825
        %v842 = vpack.c.bf16 %v828, %v827
        %v843 = vpack.c.bf16 %v830, %v829
        %v844 = vpack.c.bf16 %v832, %v831
        %v845 = vpack.c.bf16 %v834, %v833
        %v846 = vpack.c.bf16 %v836, %v835
        %v847 = vpack.c.bf16 %v838, %v837
        %v848 = vpack.c.bf16 %v840, %v839
        %v849 = vld [vmem:[%s4 + $0x80] sm:$0xf]
        %v850 = vld [vmem:[%s4 + $0x84] sm:$0xf]
        %v851 = vld [vmem:[%s4 + $0x88] sm:$0xf]
        %v852 = vld [vmem:[%s4 + $0x8c] sm:$0xf]
        %v853 = vld [vmem:[%s4 + $0x90] sm:$0xf]
        %v854 = vld [vmem:[%s4 + $0x94] sm:$0xf]
        %v855 = vld [vmem:[%s4 + $0x98] sm:$0xf]
        %v856 = vld [vmem:[%s4 + $0x9c] sm:$0xf]
        %v857 = vld [vmem:[%s4 + $0xa0] sm:$0xf]
        %v858 = vld [vmem:[%s4 + $0xa4] sm:$0xf]
        %v859 = vld [vmem:[%s4 + $0xa8] sm:$0xf]
        %v860 = vld [vmem:[%s4 + $0xac] sm:$0xf]
        %v861 = vld [vmem:[%s4 + $0xb0] sm:$0xf]
        %v862 = vld [vmem:[%s4 + $0xb4] sm:$0xf]
        %v863 = vld [vmem:[%s4 + $0xb8] sm:$0xf]
        %v864 = vld [vmem:[%s4 + $0xbc] sm:$0xf]
        %v865 = vld [vmem:[%s5 + $0x3] sm:$0x1]
        %v866 = vperm.slane %v865, 0
        %v883 = vunpack.c.l.b16 %v849
        %v884 = vunpack.c.l.b16 %v850
        %v885 = vunpack.c.l.b16 %v851
        %v886 = vunpack.c.l.b16 %v852
        %v887 = vunpack.c.l.b16 %v853
        %v888 = vunpack.c.l.b16 %v854
        %v889 = vunpack.c.l.b16 %v855
        %v890 = vunpack.c.l.b16 %v856
        %v891 = vunpack.c.l.b16 %v857
        %v892 = vunpack.c.l.b16 %v858
        %v893 = vunpack.c.l.b16 %v859
        %v894 = vunpack.c.l.b16 %v860
        %v895 = vunpack.c.l.b16 %v861
        %v896 = vunpack.c.l.b16 %v862
        %v897 = vunpack.c.l.b16 %v863
        %v898 = vunpack.c.l.b16 %v864
        %v899 = vpack.c.b16 %v884, %v883
        %v900 = vpack.c.b16 %v886, %v885
        %v901 = vpack.c.b16 %v888, %v887
        %v902 = vpack.c.b16 %v890, %v889
        %v903 = vpack.c.b16 %v892, %v891
        %v904 = vpack.c.b16 %v894, %v893
        %v905 = vpack.c.b16 %v896, %v895
        %v906 = vpack.c.b16 %v898, %v897
        %915 = vmatpush.bf16.msra.mxu0 %v906
        %916 = vmatpush.bf16.msra.mxu0 %v905
        %917 = vmatpush.bf16.msra.mxu0 %v904
        %918 = vmatpush.bf16.msra.mxu0 %v903
        %919 = vmatpush.bf16.msra.mxu0 %v902
        %920 = vmatpush.bf16.msra.mxu0 %v901
        %921 = vmatpush.bf16.msra.mxu0 %v900
        %922 = vmatpush.bf16.msra.mxu0 %v899
        %923 = vmatmul.bf16.gmra.mxu0 %v841
        %v924 = vpop.f32.mrf.mxu0
        %v925 = vadd.f32 %v866, %v924
        %v926 = vpop.f32.mrf.mxu0
        %v927 = vadd.f32 %v866, %v926
        %928 = vmatmul.bf16.gmra.mxu0 %v842
        %v929 = vpop.f32.mrf.mxu0
        %v930 = vadd.f32 %v866, %v929
        %v931 = vpop.f32.mrf.mxu0
        %v932 = vadd.f32 %v866, %v931
        %933 = vmatmul.bf16.gmra.mxu0 %v843
        %v934 = vpop.f32.mrf.mxu0
        %v935 = vadd.f32 %v866, %v934
        %v936 = vpop.f32.mrf.mxu0
        %v937 = vadd.f32 %v866, %v936
        %938 = vmatmul.bf16.gmra.mxu0 %v844
        %v939 = vpop.f32.mrf.mxu0
        %v940 = vadd.f32 %v866, %v939
        %v941 = vpop.f32.mrf.mxu0
        %v942 = vadd.f32 %v866, %v941
        %943 = vmatmul.bf16.gmra.mxu0 %v845
        %v944 = vpop.f32.mrf.mxu0
        %v945 = vadd.f32 %v866, %v944
        %v946 = vpop.f32.mrf.mxu0
        %v947 = vadd.f32 %v866, %v946
        %948 = vmatmul.bf16.gmra.mxu0 %v846
        %v949 = vpop.f32.mrf.mxu0
        %v950 = vadd.f32 %v866, %v949
        %v951 = vpop.f32.mrf.mxu0
        %v952 = vadd.f32 %v866, %v951
        %953 = vmatmul.bf16.gmra.mxu0 %v847
        %v954 = vpop.f32.mrf.mxu0
        %v955 = vadd.f32 %v866, %v954
        %v956 = vpop.f32.mrf.mxu0
        %v957 = vadd.f32 %v866, %v956
        %958 = vmatmul.bf16.gmra.mxu0 %v848
        %v959 = vpop.f32.mrf.mxu0
        %v960 = vadd.f32 %v866, %v959
        %v961 = vpop.f32.mrf.mxu0
        %v962 = vadd.f32 %v866, %v961
        %963 = vdwg.mxu0
        %v964 = vpack.c.bf16 %v925, %v925
        %v965 = vpack.c.bf16 %v927, %v927
        %v966 = vpack.c.bf16 %v930, %v930
        %v967 = vpack.c.bf16 %v932, %v932
        %v968 = vpack.c.bf16 %v935, %v935
        %v969 = vpack.c.bf16 %v937, %v937
        %v970 = vpack.c.bf16 %v940, %v940
        %v971 = vpack.c.bf16 %v942, %v942
        %v972 = vpack.c.bf16 %v945, %v945
        %v973 = vpack.c.bf16 %v947, %v947
        %v974 = vpack.c.bf16 %v950, %v950
        %v975 = vpack.c.bf16 %v952, %v952
        %v976 = vpack.c.bf16 %v955, %v955
        %v977 = vpack.c.bf16 %v957, %v957
        %v978 = vpack.c.bf16 %v960, %v960
        %v979 = vpack.c.bf16 %v962, %v962
        %v980 = vunpack.c.l.bf16 %v964
        %v981 = vunpack.c.l.bf16 %v965
        %v982 = vunpack.c.l.bf16 %v966
        %v983 = vunpack.c.l.bf16 %v967
        %v984 = vunpack.c.l.bf16 %v968
        %v985 = vunpack.c.l.bf16 %v969
        %v986 = vunpack.c.l.bf16 %v970
        %v987 = vunpack.c.l.bf16 %v971
        %v988 = vunpack.c.l.bf16 %v972
        %v989 = vunpack.c.l.bf16 %v973
        %v990 = vunpack.c.l.bf16 %v974
        %v991 = vunpack.c.l.bf16 %v975
        %v992 = vunpack.c.l.bf16 %v976
        %v993 = vunpack.c.l.bf16 %v977
        %v994 = vunpack.c.l.bf16 %v978
        %v995 = vunpack.c.l.bf16 %v979
        %v996 = vmax.f32 %v980, 0.0
        %v997 = vmax.f32 %v981, 0.0
        %v998 = vmax.f32 %v982, 0.0
        %v999 = vmax.f32 %v983, 0.0
        %v1000 = vmax.f32 %v984, 0.0
        %v1001 = vmax.f32 %v985, 0.0
        %v1002 = vmax.f32 %v986, 0.0
        %v1003 = vmax.f32 %v987, 0.0
        %v1004 = vmax.f32 %v988, 0.0
        %v1005 = vmax.f32 %v989, 0.0
        %v1006 = vmax.f32 %v990, 0.0
        %v1007 = vmax.f32 %v991, 0.0
        %v1008 = vmax.f32 %v992, 0.0
        %v1009 = vmax.f32 %v993, 0.0
        %v1010 = vmax.f32 %v994, 0.0
        %v1011 = vmax.f32 %v995, 0.0
        %v1012 = vpack.c.bf16 %v997, %v996
        %v1013 = vpack.c.bf16 %v999, %v998
        %v1014 = vpack.c.bf16 %v1001, %v1000
        %v1015 = vpack.c.bf16 %v1003, %v1002
        %v1016 = vpack.c.bf16 %v1005, %v1004
        %v1017 = vpack.c.bf16 %v1007, %v1006
        %v1018 = vpack.c.bf16 %v1009, %v1008
        %v1019 = vpack.c.bf16 %v1011, %v1010
        %v1020 = vld [vmem:[%s4 + $0xc0] sm:$0xf]
        %v1021 = vld [vmem:[%s4 + $0xc4] sm:$0xf]
        %v1022 = vld [vmem:[%s4 + $0xc8] sm:$0xf]
        %v1023 = vld [vmem:[%s4 + $0xcc] sm:$0xf]
        %v1024 = vld [vmem:[%s4 + $0xd0] sm:$0xf]
        %v1025 = vld [vmem:[%s4 + $0xd4] sm:$0xf]
        %v1026 = vld [vmem:[%s4 + $0xd8] sm:$0xf]
        %v1027 = vld [vmem:[%s4 + $0xdc] sm:$0xf]
        %v1028 = vld [vmem:[%s4 + $0xe0] sm:$0xf]
        %v1029 = vld [vmem:[%s4 + $0xe4] sm:$0xf]
        %v1030 = vld [vmem:[%s4 + $0xe8] sm:$0xf]
        %v1031 = vld [vmem:[%s4 + $0xec] sm:$0xf]
        %v1032 = vld [vmem:[%s4 + $0xf0] sm:$0xf]
        %v1033 = vld [vmem:[%s4 + $0xf4] sm:$0xf]
        %v1034 = vld [vmem:[%s4 + $0xf8] sm:$0xf]
        %v1035 = vld [vmem:[%s4 + $0xfc] sm:$0xf]
        %v1036 = vld [vmem:[%s3] sm:$0xf]
        %v1037 = vld [vmem:[%s3 + $0x4] sm:$0xf]
        %v1038 = vld [vmem:[%s3 + $0x8] sm:$0xf]
        %v1039 = vld [vmem:[%s3 + $0xc] sm:$0xf]
        %v1040 = vld [vmem:[%s3 + $0x10] sm:$0x3]
        %v1046 = vunpack.c.l.b16 %v1036
        %v1047 = vunpack.c.l.b16 %v1037
        %v1048 = vunpack.c.l.b16 %v1038
        %v1049 = vunpack.c.l.b16 %v1039
        %v1050 = vunpack.c.l.b16 %v1040
        %v1051 = vpack.c.b16 %v1047, %v1046
        %v1052 = vpack.c.b16 %v1049, %v1048
        %v1053 = vpack.c.b16 %v1050, %v1050
        %v1057 = vand.u32 %v1053, %v398
        %1059 = vmatpush.bf16.msra.mxu0 0
        %1060 = vmatpush.bf16.msra.mxu0 0
        %1061 = vmatpush.bf16.msra.mxu0 0
        %1062 = vmatpush.bf16.msra.mxu0 0
        %1063 = vmatpush.bf16.msra.mxu0 0
        %1064 = vmatpush.bf16.msra.mxu0 %v1057
        %1065 = vmatpush.bf16.msra.mxu0 %v1052
        %1066 = vmatpush.bf16.msra.mxu0 %v1051
        %1067 = vmatmul.bf16.gmra.mxu0 %v372
        %v1068 = vpop.f32.mrf.mxu0
        %v1069 = vadd.f32 0.0, %v1068
        %v1070 = vpop.f32.mrf.mxu0
        %v1071 = vadd.f32 0.0, %v1070
        %1072 = vmatmul.bf16.gmra.mxu0 %v375
        %v1073 = vpop.f32.mrf.mxu0
        %v1074 = vadd.f32 0.0, %v1073
        %v1075 = vpop.f32.mrf.mxu0
        %v1076 = vadd.f32 0.0, %v1075
        %1077 = vmatmul.bf16.gmra.mxu0 %v378
        %v1078 = vpop.f32.mrf.mxu0
        %v1079 = vadd.f32 0.0, %v1078
        %v1080 = vpop.f32.mrf.mxu0
        %v1081 = vadd.f32 0.0, %v1080
        %1082 = vmatmul.bf16.gmra.mxu0 %v381
        %v1083 = vpop.f32.mrf.mxu0
        %v1084 = vadd.f32 0.0, %v1083
        %v1085 = vpop.f32.mrf.mxu0
        %v1086 = vadd.f32 0.0, %v1085
        %1087 = vmatmul.bf16.gmra.mxu0 %v384
        %v1088 = vpop.f32.mrf.mxu0
        %v1089 = vadd.f32 0.0, %v1088
        %v1090 = vpop.f32.mrf.mxu0
        %v1091 = vadd.f32 0.0, %v1090
        %1092 = vmatmul.bf16.gmra.mxu0 %v387
        %v1093 = vpop.f32.mrf.mxu0
        %v1094 = vadd.f32 0.0, %v1093
        %v1095 = vpop.f32.mrf.mxu0
        %v1096 = vadd.f32 0.0, %v1095
        %1097 = vmatmul.bf16.gmra.mxu0 %v390
        %v1098 = vpop.f32.mrf.mxu0
        %v1099 = vadd.f32 0.0, %v1098
        %v1100 = vpop.f32.mrf.mxu0
        %v1101 = vadd.f32 0.0, %v1100
        %1102 = vmatmul.bf16.gmra.mxu0 %v393
        %v1103 = vpop.f32.mrf.mxu0
        %v1104 = vadd.f32 0.0, %v1103
        %v1105 = vpop.f32.mrf.mxu0
        %v1106 = vadd.f32 0.0, %v1105
        %1107 = vdwg.mxu0
        %v1124 = vunpack.c.l.b16 %v1020
        %v1125 = vunpack.c.l.b16 %v1021
        %v1126 = vunpack.c.l.b16 %v1022
        %v1127 = vunpack.c.l.b16 %v1023
        %v1128 = vunpack.c.l.b16 %v1024
        %v1129 = vunpack.c.l.b16 %v1025
        %v1130 = vunpack.c.l.b16 %v1026
        %v1131 = vunpack.c.l.b16 %v1027
        %v1132 = vunpack.c.l.b16 %v1028
        %v1133 = vunpack.c.l.b16 %v1029
        %v1134 = vunpack.c.l.b16 %v1030
        %v1135 = vunpack.c.l.b16 %v1031
        %v1136 = vunpack.c.l.b16 %v1032
        %v1137 = vunpack.c.l.b16 %v1033
        %v1138 = vunpack.c.l.b16 %v1034
        %v1139 = vunpack.c.l.b16 %v1035
        %v1140 = vpack.c.b16 %v1125, %v1124
        %v1141 = vpack.c.b16 %v1127, %v1126
        %v1142 = vpack.c.b16 %v1129, %v1128
        %v1143 = vpack.c.b16 %v1131, %v1130
        %v1144 = vpack.c.b16 %v1133, %v1132
        %v1145 = vpack.c.b16 %v1135, %v1134
        %v1146 = vpack.c.b16 %v1137, %v1136
        %v1147 = vpack.c.b16 %v1139, %v1138
        %1156 = vmatpush.bf16.msra.mxu0 %v1147
        %1157 = vmatpush.bf16.msra.mxu0 %v1146
        %1158 = vmatpush.bf16.msra.mxu0 %v1145
        %1159 = vmatpush.bf16.msra.mxu0 %v1144
        %1160 = vmatpush.bf16.msra.mxu0 %v1143
        %1161 = vmatpush.bf16.msra.mxu0 %v1142
        %1162 = vmatpush.bf16.msra.mxu0 %v1141
        %1163 = vmatpush.bf16.msra.mxu0 %v1140
        %1164 = vmatmul.bf16.gmra.mxu0 %v1012
        %v1165 = vpop.f32.mrf.mxu0
        %v1166 = vadd.f32 %v1069, %v1165
        %v1167 = vpop.f32.mrf.mxu0
        %v1168 = vadd.f32 %v1071, %v1167
        %1169 = vmatmul.bf16.gmra.mxu0 %v1013
        %v1170 = vpop.f32.mrf.mxu0
        %v1171 = vadd.f32 %v1074, %v1170
        %v1172 = vpop.f32.mrf.mxu0
        %v1173 = vadd.f32 %v1076, %v1172
        %1174 = vmatmul.bf16.gmra.mxu0 %v1014
        %v1175 = vpop.f32.mrf.mxu0
        %v1176 = vadd.f32 %v1079, %v1175
        %v1177 = vpop.f32.mrf.mxu0
        %v1178 = vadd.f32 %v1081, %v1177
        %1179 = vmatmul.bf16.gmra.mxu0 %v1015
        %v1180 = vpop.f32.mrf.mxu0
        %v1181 = vadd.f32 %v1084, %v1180
        %v1182 = vpop.f32.mrf.mxu0
        %v1183 = vadd.f32 %v1086, %v1182
        %1184 = vmatmul.bf16.gmra.mxu0 %v1016
        %v1185 = vpop.f32.mrf.mxu0
        %v1186 = vadd.f32 %v1089, %v1185
        %v1187 = vpop.f32.mrf.mxu0
        %v1188 = vadd.f32 %v1091, %v1187
        %1189 = vmatmul.bf16.gmra.mxu0 %v1017
        %v1190 = vpop.f32.mrf.mxu0
        %v1191 = vadd.f32 %v1094, %v1190
        %v1192 = vpop.f32.mrf.mxu0
        %v1193 = vadd.f32 %v1096, %v1192
        %1194 = vmatmul.bf16.gmra.mxu0 %v1018
        %v1195 = vpop.f32.mrf.mxu0
        %v1196 = vadd.f32 %v1099, %v1195
        %v1197 = vpop.f32.mrf.mxu0
        %v1198 = vadd.f32 %v1101, %v1197
        %1199 = vmatmul.bf16.gmra.mxu0 %v1019
        %v1200 = vpop.f32.mrf.mxu0
        %v1201 = vadd.f32 %v1104, %v1200
        %v1202 = vpop.f32.mrf.mxu0
        %v1203 = vadd.f32 %v1106, %v1202
        %1204 = vdwg.mxu0
        %v1205 = vld [vmem:[%s5 + $0x4] sm:$0x1]
        %v1206 = vperm.slane %v1205, 0
        %v1207 = vadd.f32 %v1166, %v1206
        %v1208 = vadd.f32 %v1168, %v1206
        %v1209 = vadd.f32 %v1171, %v1206
        %v1210 = vadd.f32 %v1173, %v1206
        %v1211 = vadd.f32 %v1176, %v1206
        %v1212 = vadd.f32 %v1178, %v1206
        %v1213 = vadd.f32 %v1181, %v1206
        %v1214 = vadd.f32 %v1183, %v1206
        %v1215 = vadd.f32 %v1186, %v1206
        %v1216 = vadd.f32 %v1188, %v1206
        %v1217 = vadd.f32 %v1191, %v1206
        %v1218 = vadd.f32 %v1193, %v1206
        %v1219 = vadd.f32 %v1196, %v1206
        %v1220 = vadd.f32 %v1198, %v1206
        %v1221 = vadd.f32 %v1201, %v1206
        %v1222 = vadd.f32 %v1203, %v1206
        %v1223 = vpack.c.bf16 %v1207, %v1207
        %v1224 = vpack.c.bf16 %v1208, %v1208
        %v1225 = vpack.c.bf16 %v1209, %v1209
        %v1226 = vpack.c.bf16 %v1210, %v1210
        %v1227 = vpack.c.bf16 %v1211, %v1211
        %v1228 = vpack.c.bf16 %v1212, %v1212
        %v1229 = vpack.c.bf16 %v1213, %v1213
        %v1230 = vpack.c.bf16 %v1214, %v1214
        %v1231 = vpack.c.bf16 %v1215, %v1215
        %v1232 = vpack.c.bf16 %v1216, %v1216
        %v1233 = vpack.c.bf16 %v1217, %v1217
        %v1234 = vpack.c.bf16 %v1218, %v1218
        %v1235 = vpack.c.bf16 %v1219, %v1219
        %v1236 = vpack.c.bf16 %v1220, %v1220
        %v1237 = vpack.c.bf16 %v1221, %v1221
        %v1238 = vpack.c.bf16 %v1222, %v1222
        %v1239 = vunpack.c.l.bf16 %v1223
        %v1240 = vunpack.c.l.bf16 %v1224
        %v1241 = vunpack.c.l.bf16 %v1225
        %v1242 = vunpack.c.l.bf16 %v1226
        %v1243 = vunpack.c.l.bf16 %v1227
        %v1244 = vunpack.c.l.bf16 %v1228
        %v1245 = vunpack.c.l.bf16 %v1229
        %v1246 = vunpack.c.l.bf16 %v1230
        %v1247 = vunpack.c.l.bf16 %v1231
        %v1248 = vunpack.c.l.bf16 %v1232
        %v1249 = vunpack.c.l.bf16 %v1233
        %v1250 = vunpack.c.l.bf16 %v1234
        %v1251 = vunpack.c.l.bf16 %v1235
        %v1252 = vunpack.c.l.bf16 %v1236
        %v1253 = vunpack.c.l.bf16 %v1237
        %v1254 = vunpack.c.l.bf16 %v1238
        %v1255 = vmax.f32 %v1239, 0.0
        %v1256 = vmax.f32 %v1240, 0.0
        %v1257 = vmax.f32 %v1241, 0.0
        %v1258 = vmax.f32 %v1242, 0.0
        %v1259 = vmax.f32 %v1243, 0.0
        %v1260 = vmax.f32 %v1244, 0.0
        %v1261 = vmax.f32 %v1245, 0.0
        %v1262 = vmax.f32 %v1246, 0.0
        %v1263 = vmax.f32 %v1247, 0.0
        %v1264 = vmax.f32 %v1248, 0.0
        %v1265 = vmax.f32 %v1249, 0.0
        %v1266 = vmax.f32 %v1250, 0.0
        %v1267 = vmax.f32 %v1251, 0.0
        %v1268 = vmax.f32 %v1252, 0.0
        %v1269 = vmax.f32 %v1253, 0.0
        %v1270 = vmax.f32 %v1254, 0.0
        %v1271 = vpack.c.bf16 %v1256, %v1255
        %v1272 = vpack.c.bf16 %v1258, %v1257
        %v1273 = vpack.c.bf16 %v1260, %v1259
        %v1274 = vpack.c.bf16 %v1262, %v1261
        %v1275 = vpack.c.bf16 %v1264, %v1263
        %v1276 = vpack.c.bf16 %v1266, %v1265
        %v1277 = vpack.c.bf16 %v1268, %v1267
        %v1278 = vpack.c.bf16 %v1270, %v1269
        %v1279 = vld [vmem:[%s4 + $0x100] sm:$0xf]
        %v1280 = vld [vmem:[%s4 + $0x104] sm:$0xf]
        %v1281 = vld [vmem:[%s4 + $0x108] sm:$0xf]
        %v1282 = vld [vmem:[%s4 + $0x10c] sm:$0xf]
        %v1283 = vld [vmem:[%s4 + $0x110] sm:$0xf]
        %v1284 = vld [vmem:[%s4 + $0x114] sm:$0xf]
        %v1285 = vld [vmem:[%s4 + $0x118] sm:$0xf]
        %v1286 = vld [vmem:[%s4 + $0x11c] sm:$0xf]
        %v1287 = vld [vmem:[%s4 + $0x120] sm:$0xf]
        %v1288 = vld [vmem:[%s4 + $0x124] sm:$0xf]
        %v1289 = vld [vmem:[%s4 + $0x128] sm:$0xf]
        %v1290 = vld [vmem:[%s4 + $0x12c] sm:$0xf]
        %v1291 = vld [vmem:[%s4 + $0x130] sm:$0xf]
        %v1292 = vld [vmem:[%s4 + $0x134] sm:$0xf]
        %v1293 = vld [vmem:[%s4 + $0x138] sm:$0xf]
        %v1294 = vld [vmem:[%s4 + $0x13c] sm:$0xf]
        %v1295 = vld [vmem:[%s5 + $0x5] sm:$0x1]
        %v1296 = vperm.slane %v1295, 0
        %v1313 = vunpack.c.l.b16 %v1279
        %v1314 = vunpack.c.l.b16 %v1280
        %v1315 = vunpack.c.l.b16 %v1281
        %v1316 = vunpack.c.l.b16 %v1282
        %v1317 = vunpack.c.l.b16 %v1283
        %v1318 = vunpack.c.l.b16 %v1284
        %v1319 = vunpack.c.l.b16 %v1285
        %v1320 = vunpack.c.l.b16 %v1286
        %v1321 = vunpack.c.l.b16 %v1287
        %v1322 = vunpack.c.l.b16 %v1288
        %v1323 = vunpack.c.l.b16 %v1289
        %v1324 = vunpack.c.l.b16 %v1290
        %v1325 = vunpack.c.l.b16 %v1291
        %v1326 = vunpack.c.l.b16 %v1292
        %v1327 = vunpack.c.l.b16 %v1293
        %v1328 = vunpack.c.l.b16 %v1294
        %v1329 = vpack.c.b16 %v1314, %v1313
        %v1330 = vpack.c.b16 %v1316, %v1315
        %v1331 = vpack.c.b16 %v1318, %v1317
        %v1332 = vpack.c.b16 %v1320, %v1319
        %v1333 = vpack.c.b16 %v1322, %v1321
        %v1334 = vpack.c.b16 %v1324, %v1323
        %v1335 = vpack.c.b16 %v1326, %v1325
        %v1336 = vpack.c.b16 %v1328, %v1327
        %1345 = vmatpush.bf16.msra.mxu0 %v1336
        %1346 = vmatpush.bf16.msra.mxu0 %v1335
        %1347 = vmatpush.bf16.msra.mxu0 %v1334
        %1348 = vmatpush.bf16.msra.mxu0 %v1333
        %1349 = vmatpush.bf16.msra.mxu0 %v1332
        %1350 = vmatpush.bf16.msra.mxu0 %v1331
        %1351 = vmatpush.bf16.msra.mxu0 %v1330
        %1352 = vmatpush.bf16.msra.mxu0 %v1329
        %1353 = vmatmul.bf16.gmra.mxu0 %v1271
        %v1354 = vpop.f32.mrf.mxu0
        %v1355 = vadd.f32 %v1296, %v1354
        %v1356 = vpop.f32.mrf.mxu0
        %v1357 = vadd.f32 %v1296, %v1356
        %1358 = vmatmul.bf16.gmra.mxu0 %v1272
        %v1359 = vpop.f32.mrf.mxu0
        %v1360 = vadd.f32 %v1296, %v1359
        %v1361 = vpop.f32.mrf.mxu0
        %v1362 = vadd.f32 %v1296, %v1361
        %1363 = vmatmul.bf16.gmra.mxu0 %v1273
        %v1364 = vpop.f32.mrf.mxu0
        %v1365 = vadd.f32 %v1296, %v1364
        %v1366 = vpop.f32.mrf.mxu0
        %v1367 = vadd.f32 %v1296, %v1366
        %1368 = vmatmul.bf16.gmra.mxu0 %v1274
        %v1369 = vpop.f32.mrf.mxu0
        %v1370 = vadd.f32 %v1296, %v1369
        %v1371 = vpop.f32.mrf.mxu0
        %v1372 = vadd.f32 %v1296, %v1371
        %1373 = vmatmul.bf16.gmra.mxu0 %v1275
        %v1374 = vpop.f32.mrf.mxu0
        %v1375 = vadd.f32 %v1296, %v1374
        %v1376 = vpop.f32.mrf.mxu0
        %v1377 = vadd.f32 %v1296, %v1376
        %1378 = vmatmul.bf16.gmra.mxu0 %v1276
        %v1379 = vpop.f32.mrf.mxu0
        %v1380 = vadd.f32 %v1296, %v1379
        %v1381 = vpop.f32.mrf.mxu0
        %v1382 = vadd.f32 %v1296, %v1381
        %1383 = vmatmul.bf16.gmra.mxu0 %v1277
        %v1384 = vpop.f32.mrf.mxu0
        %v1385 = vadd.f32 %v1296, %v1384
        %v1386 = vpop.f32.mrf.mxu0
        %v1387 = vadd.f32 %v1296, %v1386
        %1388 = vmatmul.bf16.gmra.mxu0 %v1278
        %v1389 = vpop.f32.mrf.mxu0
        %v1390 = vadd.f32 %v1296, %v1389
        %v1391 = vpop.f32.mrf.mxu0
        %v1392 = vadd.f32 %v1296, %v1391
        %1393 = vdwg.mxu0
        %v1394 = vpack.c.bf16 %v1355, %v1355
        %v1395 = vpack.c.bf16 %v1357, %v1357
        %v1396 = vpack.c.bf16 %v1360, %v1360
        %v1397 = vpack.c.bf16 %v1362, %v1362
        %v1398 = vpack.c.bf16 %v1365, %v1365
        %v1399 = vpack.c.bf16 %v1367, %v1367
        %v1400 = vpack.c.bf16 %v1370, %v1370
        %v1401 = vpack.c.bf16 %v1372, %v1372
        %v1402 = vpack.c.bf16 %v1375, %v1375
        %v1403 = vpack.c.bf16 %v1377, %v1377
        %v1404 = vpack.c.bf16 %v1380, %v1380
        %v1405 = vpack.c.bf16 %v1382, %v1382
        %v1406 = vpack.c.bf16 %v1385, %v1385
        %v1407 = vpack.c.bf16 %v1387, %v1387
        %v1408 = vpack.c.bf16 %v1390, %v1390
        %v1409 = vpack.c.bf16 %v1392, %v1392
        %v1410 = vunpack.c.l.bf16 %v1394
        %v1411 = vunpack.c.l.bf16 %v1395
        %v1412 = vunpack.c.l.bf16 %v1396
        %v1413 = vunpack.c.l.bf16 %v1397
        %v1414 = vunpack.c.l.bf16 %v1398
        %v1415 = vunpack.c.l.bf16 %v1399
        %v1416 = vunpack.c.l.bf16 %v1400
        %v1417 = vunpack.c.l.bf16 %v1401
        %v1418 = vunpack.c.l.bf16 %v1402
        %v1419 = vunpack.c.l.bf16 %v1403
        %v1420 = vunpack.c.l.bf16 %v1404
        %v1421 = vunpack.c.l.bf16 %v1405
        %v1422 = vunpack.c.l.bf16 %v1406
        %v1423 = vunpack.c.l.bf16 %v1407
        %v1424 = vunpack.c.l.bf16 %v1408
        %v1425 = vunpack.c.l.bf16 %v1409
        %v1426 = vmax.f32 %v1410, 0.0
        %v1427 = vmax.f32 %v1411, 0.0
        %v1428 = vmax.f32 %v1412, 0.0
        %v1429 = vmax.f32 %v1413, 0.0
        %v1430 = vmax.f32 %v1414, 0.0
        %v1431 = vmax.f32 %v1415, 0.0
        %v1432 = vmax.f32 %v1416, 0.0
        %v1433 = vmax.f32 %v1417, 0.0
        %v1434 = vmax.f32 %v1418, 0.0
        %v1435 = vmax.f32 %v1419, 0.0
        %v1436 = vmax.f32 %v1420, 0.0
        %v1437 = vmax.f32 %v1421, 0.0
        %v1438 = vmax.f32 %v1422, 0.0
        %v1439 = vmax.f32 %v1423, 0.0
        %v1440 = vmax.f32 %v1424, 0.0
        %v1441 = vmax.f32 %v1425, 0.0
        %v1442 = vpack.c.bf16 %v1427, %v1426
        %v1443 = vpack.c.bf16 %v1429, %v1428
        %v1444 = vpack.c.bf16 %v1431, %v1430
        %v1445 = vpack.c.bf16 %v1433, %v1432
        %v1446 = vpack.c.bf16 %v1435, %v1434
        %v1447 = vpack.c.bf16 %v1437, %v1436
        %v1448 = vpack.c.bf16 %v1439, %v1438
        %v1449 = vpack.c.bf16 %v1441, %v1440
        %v1450 = vld [vmem:[%s6] sm:$0xf]
        %v1451 = vld [vmem:[%s6 + $0x4] sm:$0xf]
        %v1452 = vld [vmem:[%s6 + $0x8] sm:$0xf]
        %v1453 = vld [vmem:[%s6 + $0xc] sm:$0xf]
        %v1454 = vld [vmem:[%s6 + $0x10] sm:$0xf]
        %v1455 = vld [vmem:[%s6 + $0x14] sm:$0xf]
        %v1456 = vld [vmem:[%s6 + $0x18] sm:$0xf]
        %v1457 = vld [vmem:[%s6 + $0x1c] sm:$0xf]
        %v1458 = vld [vmem:[%s6 + $0x20] sm:$0xf]
        %v1459 = vld [vmem:[%s6 + $0x24] sm:$0xf]
        %v1460 = vld [vmem:[%s6 + $0x28] sm:$0xf]
        %v1461 = vld [vmem:[%s6 + $0x2c] sm:$0xf]
        %v1462 = vld [vmem:[%s6 + $0x30] sm:$0xf]
        %v1463 = vld [vmem:[%s6 + $0x34] sm:$0xf]
        %v1464 = vld [vmem:[%s6 + $0x38] sm:$0xf]
        %v1465 = vld [vmem:[%s6 + $0x3c] sm:$0xf]
        %v1466 = vld [vmem:[%s7] sm:$0x1]
        %v1468 = vperm.slane %v1466, 0
        %v1486 = vunpack.c.l.b16 %v1450
        %v1487 = vunpack.c.l.b16 %v1451
        %v1488 = vunpack.c.l.b16 %v1452
        %v1489 = vunpack.c.l.b16 %v1453
        %v1490 = vunpack.c.l.b16 %v1454
        %v1491 = vunpack.c.l.b16 %v1455
        %v1492 = vunpack.c.l.b16 %v1456
        %v1493 = vunpack.c.l.b16 %v1457
        %v1494 = vunpack.c.l.b16 %v1458
        %v1495 = vunpack.c.l.b16 %v1459
        %v1496 = vunpack.c.l.b16 %v1460
        %v1497 = vunpack.c.l.b16 %v1461
        %v1498 = vunpack.c.l.b16 %v1462
        %v1499 = vunpack.c.l.b16 %v1463
        %v1500 = vunpack.c.l.b16 %v1464
        %v1501 = vunpack.c.l.b16 %v1465
        %v1502 = vpack.c.b16 %v1487, %v1486
        %v1503 = vpack.c.b16 %v1489, %v1488
        %v1504 = vpack.c.b16 %v1491, %v1490
        %v1505 = vpack.c.b16 %v1493, %v1492
        %v1506 = vpack.c.b16 %v1495, %v1494
        %v1507 = vpack.c.b16 %v1497, %v1496
        %v1508 = vpack.c.b16 %v1499, %v1498
        %v1509 = vpack.c.b16 %v1501, %v1500
        %1518 = vmatpush.bf16.msra.mxu0 %v1509
        %1519 = vmatpush.bf16.msra.mxu0 %v1508
        %1520 = vmatpush.bf16.msra.mxu0 %v1507
        %1521 = vmatpush.bf16.msra.mxu0 %v1506
        %1522 = vmatpush.bf16.msra.mxu0 %v1505
        %1523 = vmatpush.bf16.msra.mxu0 %v1504
        %1524 = vmatpush.bf16.msra.mxu0 %v1503
        %1525 = vmatpush.bf16.msra.mxu0 %v1502
        %1526 = vmatmul.bf16.gmra.mxu0 %v1442
        %v1527 = vpop.f32.mrf.mxu0
        %v1528 = vadd.f32 %v1468, %v1527
        %v1529 = vpop.f32.mrf.mxu0
        %v1530 = vadd.f32 %v1468, %v1529
        %1531 = vmatmul.bf16.gmra.mxu0 %v1443
        %v1532 = vpop.f32.mrf.mxu0
        %v1533 = vadd.f32 %v1468, %v1532
        %v1534 = vpop.f32.mrf.mxu0
        %v1535 = vadd.f32 %v1468, %v1534
        %1536 = vmatmul.bf16.gmra.mxu0 %v1444
        %v1537 = vpop.f32.mrf.mxu0
        %v1538 = vadd.f32 %v1468, %v1537
        %v1539 = vpop.f32.mrf.mxu0
        %v1540 = vadd.f32 %v1468, %v1539
        %1541 = vmatmul.bf16.gmra.mxu0 %v1445
        %v1542 = vpop.f32.mrf.mxu0
        %v1543 = vadd.f32 %v1468, %v1542
        %v1544 = vpop.f32.mrf.mxu0
        %v1545 = vadd.f32 %v1468, %v1544
        %1546 = vmatmul.bf16.gmra.mxu0 %v1446
        %v1547 = vpop.f32.mrf.mxu0
        %v1548 = vadd.f32 %v1468, %v1547
        %v1549 = vpop.f32.mrf.mxu0
        %v1550 = vadd.f32 %v1468, %v1549
        %1551 = vmatmul.bf16.gmra.mxu0 %v1447
        %v1552 = vpop.f32.mrf.mxu0
        %v1553 = vadd.f32 %v1468, %v1552
        %v1554 = vpop.f32.mrf.mxu0
        %v1555 = vadd.f32 %v1468, %v1554
        %1556 = vmatmul.bf16.gmra.mxu0 %v1448
        %v1557 = vpop.f32.mrf.mxu0
        %v1558 = vadd.f32 %v1468, %v1557
        %v1559 = vpop.f32.mrf.mxu0
        %v1560 = vadd.f32 %v1468, %v1559
        %1561 = vmatmul.bf16.gmra.mxu0 %v1449
        %v1562 = vpop.f32.mrf.mxu0
        %v1563 = vadd.f32 %v1468, %v1562
        %v1564 = vpop.f32.mrf.mxu0
        %v1565 = vadd.f32 %v1468, %v1564
        %1566 = vdwg.mxu0
        %1567 = vxpose.xlu0.b32.start [1/16] %v1528, 128
        %1568 = vxpose.xlu0.b32.cont [2/16] %v1530, 128
        %1569 = vxpose.xlu0.b32.cont [3/16] %v1533, 128
        %1570 = vxpose.xlu0.b32.cont [4/16] %v1535, 128
        %1571 = vxpose.xlu0.b32.cont [5/16] %v1538, 128
        %1572 = vxpose.xlu0.b32.cont [6/16] %v1540, 128
        %1573 = vxpose.xlu0.b32.cont [7/16] %v1543, 128
        %1574 = vxpose.xlu0.b32.cont [8/16] %v1545, 128
        %1575 = vxpose.xlu0.b32.cont [9/16] %v1548, 128
        %1576 = vxpose.xlu0.b32.cont [10/16] %v1550, 128
        %1577 = vxpose.xlu0.b32.cont [11/16] %v1553, 128
        %1578 = vxpose.xlu0.b32.cont [12/16] %v1555, 128
        %1579 = vxpose.xlu0.b32.cont [13/16] %v1558, 128
        %1580 = vxpose.xlu0.b32.cont [14/16] %v1560, 128
        %1581 = vxpose.xlu0.b32.cont [15/16] %v1563, 128
        %1582 = vxpose.xlu0.b32.end [16/16] %v1565, 128
        %v1583 = vpop.trf.xlu0
        %v1584 = vpop.trf.xlu0
        %v1585 = vpop.trf.xlu0
        %v1586 = vpop.trf.xlu0
        %v1587 = vpop.trf.xlu0
        %v1588 = vpop.trf.xlu0
        %v1589 = vpop.trf.xlu0
        %v1590 = vpop.trf.xlu0
        %v1591 = vpop.trf.xlu0
        %v1592 = vpop.trf.xlu0
        %v1593 = vpop.trf.xlu0
        %v1594 = vpop.trf.xlu0
        %v1595 = vpop.trf.xlu0
        %v1596 = vpop.trf.xlu0
        %v1597 = vpop.trf.xlu0
        %v1598 = vpop.trf.xlu0
        %v1599 = vld [vmem:[%s322] sm:$0x1]
        %v1600 = vld [vmem:[%s322 + $0x1] sm:$0x1]
        %v1601 = vld [vmem:[%s322 + $0x2] sm:$0x1]
        %v1602 = vmul.f32 %v1583, %v1583
        %v1604 = vrot.slane %v1602, 1
        %v1606 = vadd.f32 %v1602, %v1604
        %v1607 = vrot.slane %v1602, 2
        %v1609 = vadd.f32 %v1606, %v1607
        %v1610 = vrsqrt.pop %v1609
        %v1611 = vmul.f32 %v1610, %v1609
        %v1612 = vmul.f32 %v1611, %v1610
        %v1613 = vmul.f32 0.5, %v1612
        %v1614 = vsub.f32 1.5, %v1613
        %v1615 = vmul.f32 %v1610, %v1614
        %v1616 = vmul.f32 %v1609, %v1615
        %vm1617 = vcmp.eq.f32.partialorder %v1609, inf
        %v1618 = vsel %vm1617, %v1609, %v1616
        %vm1619 = vcmp.eq.f32.partialorder %v1609, 0.0
        %v1620 = vand.u32 %v1609, 2147483648
        %v1621 = vsel %vm1619, %v1620, %v1618
        %v1622 = vadd.f32 %v1621, 1e-12
        %v1623 = vrcp.pop %v1622
        %v1624 = vmul.f32 %v1583, %v1623
        %v1626 = vrot.slane %v1623, 7
        %v1628 = vmul.f32 %v1583, %v1626
        %v1629 = vrot.slane %v1623, 6
        %v1631 = vmul.f32 %v1583, %v1629
        %v1632 = vrot.slane %v1623, 4
        %v1634 = vmul.f32 %v1583, %v1632
        %v1635 = vrot.slane %v1623, 3
        %v1637 = vmul.f32 %v1583, %v1635
        %v1638 = vrot.slane %v1623, 2
        %v1640 = vmul.f32 %v1583, %v1638
        %v1641 = vand.u32 2147483647, %v1621
        %vm1642 = vcmp.le.f32.partialorder %v1641, 0.7853982
        %vm1643 = vcmp.lt.s32.totalorder %v1621, 0
        %v1644 = vand.u32 %v1621, 2139095040
        %v1645 = vshrl.u32 %v1644, 23
        %v1646 = vsub.s32 %v1645, 127
        %v1647 = vand.u32 2147483647, %v1621
        %v1648 = vand.u32 %v1647, 8388607
        %v1649 = vor.u32 %v1648, 8388608
        %v1650 = vsub.s32 0, %v1649
        %v1651 = vadd.s32 %v1646, 1
        %vm1652 = vcmp.gt.s32.totalorder %v1651, 0
        %v1653 = vsel %vm1652, %v1651, 0
        %v1654 = vshrl.u32 %v1653, 5
        %v1655 = vand.u32 %v1653, 31
        %v1656 = vsub.s32 32, %v1655
        %v1657 = vshrl.u32 683565275, %v1656
        %v1658 = vshll.u32 683565275, %v1655
        %v1659 = vshrl.u32 2475754826, %v1656
        %v1660 = vor.u32 %v1658, %v1659
        %v1661 = vshll.u32 2475754826, %v1655
        %v1662 = vshrl.u32 2131351028, %v1656
        %v1663 = vor.u32 %v1661, %v1662
        %v1664 = vshll.u32 2131351028, %v1655
        %v1665 = vshrl.u32 2102212464, %v1656
        %v1666 = vor.u32 %v1664, %v1665
        %v1667 = vshll.u32 2102212464, %v1655
        %v1668 = vshrl.u32 920167782, %v1656
        %v1669 = vor.u32 %v1667, %v1668
        %v1670 = vshll.u32 920167782, %v1655
        %v1671 = vshrl.u32 1326507024, %v1656
        %v1672 = vor.u32 %v1670, %v1671
        %vm1673 = vcmp.lt.s32.totalorder %v1654, 1
        %vm1674 = vcmp.lt.s32.totalorder %v1654, 2
        %vm1675 = vcmp.lt.s32.totalorder %v1654, 3
        %vm1676 = vcmp.lt.s32.totalorder %v1654, 4
        %v1677 = vsel %vm1673, %v1657, %v1660
        %v1678 = vsel %vm1676, %v1666, 2102212464
        %v1679 = vsel %vm1675, %v1663, %v1678
        %v1680 = vsel %vm1674, %v1677, %v1679
        %v1681 = vsel %vm1673, %v1660, %v1663
        %v1682 = vsel %vm1676, %v1669, 920167782
        %v1683 = vsel %vm1675, %v1666, %v1682
        %v1684 = vsel %vm1674, %v1681, %v1683
        %v1685 = vsel %vm1673, %v1663, %v1666
        %v1686 = vsel %vm1676, %v1672, 1326507024
        %v1687 = vsel %vm1675, %v1669, %v1686
        %v1688 = vsel %vm1674, %v1685, %v1687
        %v1689 = vshll.u32 %v1649, 8
        %v1690 = vand.u32 %v1689, 65535
        %v1691 = vshrl.u32 %v1689, 16
        %v1692 = vand.u32 %v1688, 65535
        %v1693 = vshrl.u32 %v1688, 16
        %v1694 = vmul.u32 %v1690, %v1692
        %v1695 = vmul.u32 %v1690, %v1693
        %v1696 = vmul.u32 %v1691, %v1692
        %v1697 = vmul.u32 %v1691, %v1693
        %v1698 = vshll.u32 %v1695, 16
        %v1699 = vshrl.u32 %v1695, 16
        %v1700 = vshll.u32 %v1696, 16
        %v1701 = vshrl.u32 %v1696, 16
        %vm1702 = vc.u32 %v1694, %v1698
        %v1703 = vsel %vm1702, 1, 0
        %v1704 = vadd.s32 %v1694, %v1698
        %v1705 = vadd.s32 %v1697, %v1703
        %vm1706 = vc.u32 %v1704, %v1700
        %v1707 = vsel %vm1706, 1, 0
        %v1708 = vadd.s32 %v1704, %v1700
        %v1709 = vadd.s32 %v1705, %v1707
        %v1710 = vadd.s32 %v1709, %v1699
        %v1711 = vadd.s32 %v1710, %v1701
        %v1712 = vand.u32 %v1689, 65535
        %v1713 = vshrl.u32 %v1689, 16
        %v1714 = vand.u32 %v1684, 65535
        %v1715 = vshrl.u32 %v1684, 16
        %v1716 = vmul.u32 %v1712, %v1714
        %v1717 = vmul.u32 %v1712, %v1715
        %v1718 = vmul.u32 %v1713, %v1714
        %v1719 = vmul.u32 %v1713, %v1715
        %v1720 = vshll.u32 %v1717, 16
        %v1721 = vshrl.u32 %v1717, 16
        %v1722 = vshll.u32 %v1718, 16
        %v1723 = vshrl.u32 %v1718, 16
        %vm1724 = vc.u32 %v1716, %v1720
        %v1725 = vsel %vm1724, 1, 0
        %v1726 = vadd.s32 %v1716, %v1720
        %v1727 = vadd.s32 %v1719, %v1725
        %vm1728 = vc.u32 %v1726, %v1722
        %v1729 = vsel %vm1728, 1, 0
        %v1730 = vadd.s32 %v1726, %v1722
        %v1731 = vadd.s32 %v1727, %v1729
        %v1732 = vadd.s32 %v1731, %v1721
        %v1733 = vadd.s32 %v1732, %v1723
        %v1734 = vmul.u32 %v1689, %v1680
        %v1735 = vadd.s32 %v1711, %v1730
        %vm1736 = vc.u32 %v1711, %v1730
        %v1737 = vadd.s32 %v1733, 1
        %v1738 = vsel %vm1736, %v1737, %v1733
        %v1739 = vadd.s32 %v1734, %v1738
        %v1740 = vadd.s32 %v1739, 536870912
        %v1741 = vshrl.u32 %v1740, 30
        %v1742 = vshll.u32 %v1741, 30
        %v1743 = vsub.s32 %v1739, %v1742
        %vm1744 = vcmp.lt.s32.totalorder %v1743, 0
        %v1745 = vsub.s32 0, %v1743
        %v1746 = vsel %vm1744, %v1745, %v1743
        %v1747 = vclz %v1746
        %v1748 = vsub.s32 %v1747, 2
        %vm1749 = vcmp.gt.s32.totalorder 0, %v1748
        %v1750 = vsel %vm1749, 0, %v1748
        %v1751 = vsub.s32 32, %v1750
        %v1752 = vshll.u32 %v1743, %v1750
        %v1753 = vshrl.u32 %v1735, %v1751
        %v1754 = vor.u32 %v1752, %v1753
        %v1755 = vsub.s32 4294967266, %v1750
        %v1756 = vadd.s32 %v1755, 127
        %v1757 = vshll.u32 %v1756, 23
        %v1758 = vor.u32 4788187, %v1757
        %v1759 = vand.u32 2147483647, %v1758
        %v1761 = vcvt.s32.f32 %v1754
        %v1762 = vmul.f32 %v1761, %v1759
        %v1763 = vxor.u32 %v1762, 2147483648
        %v1764 = vsel %vm1643, %v1763, %v1762
        %v1765 = vsub.s32 4, %v1741
        %v1766 = vsel %vm1643, %v1765, %v1741
        %v1767 = vsel %vm1642, %v1621, %v1764
        %v1768 = vsel %vm1642, 0, %v1766
        %v1769 = vmul.f32 %v1767, %v1767
        %v1770 = vmul.f32 %v1769, -0.001358992
        %v1771 = vadd.f32 %v1770, 0.041655596
        %v1772 = vmul.f32 %v1769, %v1771
        %v1773 = vadd.f32 %v1772, -0.4999988
        %v1774 = vmul.f32 %v1769, %v1773
        %v1775 = vadd.f32 1.0, %v1774
        %v1776 = vmul.f32 %v1767, %v1767
        %v1777 = vmul.f32 %v1776, -0.00019511016
        %v1778 = vadd.f32 %v1777, 0.008332121
        %v1779 = vmul.f32 %v1776, %v1778
        %v1780 = vadd.f32 %v1779, -0.16666654
        %v1781 = vmul.f32 %v1776, %v1780
        %v1782 = vadd.f32 %v1781, 1.0
        %v1783 = vmul.f32 %v1782, %v1767
        %vm1784 = vweird.f32 %v1621
        %v1785 = vadd.s32 %v1768, 3
        %v1786 = vand.u32 %v1785, 3
        %vm1787 = vcmp.lt.s32.totalorder %v1786, 2
        %vm1788 = vcmp.eq.s32.totalorder %v1786, 0
        %v1789 = vxor.u32 %v1783, 2147483648
        %v1790 = vsel %vm1788, %v1775, %v1789
        %vm1791 = vcmp.eq.s32.totalorder %v1786, 2
        %v1792 = vxor.u32 %v1775, 2147483648
        %v1793 = vsel %vm1791, %v1792, %v1783
        %v1794 = vsel %vm1787, %v1790, %v1793
        %v1795 = vsel %vm1784, nan, %v1794
        %v1796 = vand.u32 2147483647, %v1621
        %vm1797 = vcmp.le.f32.partialorder %v1796, 0.7853982
        %vm1798 = vcmp.lt.s32.totalorder %v1621, 0
        %v1799 = vand.u32 %v1621, 2139095040
        %v1800 = vshrl.u32 %v1799, 23
        %v1801 = vsub.s32 %v1800, 127
        %v1802 = vand.u32 2147483647, %v1621
        %v1803 = vand.u32 %v1802, 8388607
        %v1804 = vor.u32 %v1803, 8388608
        %v1805 = vsub.s32 0, %v1804
        %v1806 = vadd.s32 %v1801, 1
        %vm1807 = vcmp.gt.s32.totalorder %v1806, 0
        %v1808 = vsel %vm1807, %v1806, 0
        %v1809 = vshrl.u32 %v1808, 5
        %v1810 = vand.u32 %v1808, 31
        %v1811 = vsub.s32 32, %v1810
        %v1812 = vshrl.u32 683565275, %v1811
        %v1813 = vshll.u32 683565275, %v1810
        %v1814 = vshrl.u32 2475754826, %v1811
        %v1815 = vor.u32 %v1813, %v1814
        %v1816 = vshll.u32 2475754826, %v1810
        %v1817 = vshrl.u32 2131351028, %v1811
        %v1818 = vor.u32 %v1816, %v1817
        %v1819 = vshll.u32 2131351028, %v1810
        %v1820 = vshrl.u32 2102212464, %v1811
        %v1821 = vor.u32 %v1819, %v1820
        %v1822 = vshll.u32 2102212464, %v1810
        %v1823 = vshrl.u32 920167782, %v1811
        %v1824 = vor.u32 %v1822, %v1823
        %v1825 = vshll.u32 920167782, %v1810
        %v1826 = vshrl.u32 1326507024, %v1811
        %v1827 = vor.u32 %v1825, %v1826
        %vm1828 = vcmp.lt.s32.totalorder %v1809, 1
        %vm1829 = vcmp.lt.s32.totalorder %v1809, 2
        %vm1830 = vcmp.lt.s32.totalorder %v1809, 3
        %vm1831 = vcmp.lt.s32.totalorder %v1809, 4
        %v1832 = vsel %vm1828, %v1812, %v1815
        %v1833 = vsel %vm1831, %v1821, 2102212464
        %v1834 = vsel %vm1830, %v1818, %v1833
        %v1835 = vsel %vm1829, %v1832, %v1834
        %v1836 = vsel %vm1828, %v1815, %v1818
        %v1837 = vsel %vm1831, %v1824, 920167782
        %v1838 = vsel %vm1830, %v1821, %v1837
        %v1839 = vsel %vm1829, %v1836, %v1838
        %v1840 = vsel %vm1828, %v1818, %v1821
        %v1841 = vsel %vm1831, %v1827, 1326507024
        %v1842 = vsel %vm1830, %v1824, %v1841
        %v1843 = vsel %vm1829, %v1840, %v1842
        %v1844 = vshll.u32 %v1804, 8
        %v1845 = vand.u32 %v1844, 65535
        %v1846 = vshrl.u32 %v1844, 16
        %v1847 = vand.u32 %v1843, 65535
        %v1848 = vshrl.u32 %v1843, 16
        %v1849 = vmul.u32 %v1845, %v1847
        %v1850 = vmul.u32 %v1845, %v1848
        %v1851 = vmul.u32 %v1846, %v1847
        %v1852 = vmul.u32 %v1846, %v1848
        %v1853 = vshll.u32 %v1850, 16
        %v1854 = vshrl.u32 %v1850, 16
        %v1855 = vshll.u32 %v1851, 16
        %v1856 = vshrl.u32 %v1851, 16
        %vm1857 = vc.u32 %v1849, %v1853
        %v1858 = vsel %vm1857, 1, 0
        %v1859 = vadd.s32 %v1849, %v1853
        %v1860 = vadd.s32 %v1852, %v1858
        %vm1861 = vc.u32 %v1859, %v1855
        %v1862 = vsel %vm1861, 1, 0
        %v1863 = vadd.s32 %v1859, %v1855
        %v1864 = vadd.s32 %v1860, %v1862
        %v1865 = vadd.s32 %v1864, %v1854
        %v1866 = vadd.s32 %v1865, %v1856
        %v1867 = vand.u32 %v1844, 65535
        %v1868 = vshrl.u32 %v1844, 16
        %v1869 = vand.u32 %v1839, 65535
        %v1870 = vshrl.u32 %v1839, 16
        %v1871 = vmul.u32 %v1867, %v1869
        %v1872 = vmul.u32 %v1867, %v1870
        %v1873 = vmul.u32 %v1868, %v1869
        %v1874 = vmul.u32 %v1868, %v1870
        %v1875 = vshll.u32 %v1872, 16
        %v1876 = vshrl.u32 %v1872, 16
        %v1877 = vshll.u32 %v1873, 16
        %v1878 = vshrl.u32 %v1873, 16
        %vm1879 = vc.u32 %v1871, %v1875
        %v1880 = vsel %vm1879, 1, 0
        %v1881 = vadd.s32 %v1871, %v1875
        %v1882 = vadd.s32 %v1874, %v1880
        %vm1883 = vc.u32 %v1881, %v1877
        %v1884 = vsel %vm1883, 1, 0
        %v1885 = vadd.s32 %v1881, %v1877
        %v1886 = vadd.s32 %v1882, %v1884
        %v1887 = vadd.s32 %v1886, %v1876
        %v1888 = vadd.s32 %v1887, %v1878
        %v1889 = vmul.u32 %v1844, %v1835
        %v1890 = vadd.s32 %v1866, %v1885
        %vm1891 = vc.u32 %v1866, %v1885
        %v1892 = vadd.s32 %v1888, 1
        %v1893 = vsel %vm1891, %v1892, %v1888
        %v1894 = vadd.s32 %v1889, %v1893
        %v1895 = vadd.s32 %v1894, 536870912
        %v1896 = vshrl.u32 %v1895, 30
        %v1897 = vshll.u32 %v1896, 30
        %v1898 = vsub.s32 %v1894, %v1897
        %vm1899 = vcmp.lt.s32.totalorder %v1898, 0
        %v1900 = vsub.s32 0, %v1898
        %v1901 = vsel %vm1899, %v1900, %v1898
        %v1902 = vclz %v1901
        %v1903 = vsub.s32 %v1902, 2
        %vm1904 = vcmp.gt.s32.totalorder 0, %v1903
        %v1905 = vsel %vm1904, 0, %v1903
        %v1906 = vsub.s32 32, %v1905
        %v1907 = vshll.u32 %v1898, %v1905
        %v1908 = vshrl.u32 %v1890, %v1906
        %v1909 = vor.u32 %v1907, %v1908
        %v1910 = vsub.s32 4294967266, %v1905
        %v1911 = vadd.s32 %v1910, 127
        %v1912 = vshll.u32 %v1911, 23
        %v1913 = vor.u32 4788187, %v1912
        %v1914 = vand.u32 2147483647, %v1913
        %v1916 = vcvt.s32.f32 %v1909
        %v1917 = vmul.f32 %v1916, %v1914
        %v1918 = vxor.u32 %v1917, 2147483648
        %v1919 = vsel %vm1798, %v1918, %v1917
        %v1920 = vsub.s32 4, %v1896
        %v1921 = vsel %vm1798, %v1920, %v1896
        %v1922 = vsel %vm1797, %v1621, %v1919
        %v1923 = vsel %vm1797, 0, %v1921
        %v1924 = vmul.f32 %v1922, %v1922
        %v1925 = vmul.f32 %v1924, -0.001358992
        %v1926 = vadd.f32 %v1925, 0.041655596
        %v1927 = vmul.f32 %v1924, %v1926
        %v1928 = vadd.f32 %v1927, -0.4999988
        %v1929 = vmul.f32 %v1924, %v1928
        %v1930 = vadd.f32 1.0, %v1929
        %v1931 = vmul.f32 %v1922, %v1922
        %v1932 = vmul.f32 %v1931, -0.00019511016
        %v1933 = vadd.f32 %v1932, 0.008332121
        %v1934 = vmul.f32 %v1931, %v1933
        %v1935 = vadd.f32 %v1934, -0.16666654
        %v1936 = vmul.f32 %v1931, %v1935
        %v1937 = vadd.f32 %v1936, 1.0
        %v1938 = vmul.f32 %v1937, %v1922
        %vm1939 = vweird.f32 %v1621
        %v1940 = vand.u32 %v1923, 3
        %vm1941 = vcmp.lt.s32.totalorder %v1940, 2
        %vm1942 = vcmp.eq.s32.totalorder %v1940, 0
        %v1943 = vxor.u32 %v1938, 2147483648
        %v1944 = vsel %vm1942, %v1930, %v1943
        %vm1945 = vcmp.eq.s32.totalorder %v1940, 2
        %v1946 = vxor.u32 %v1930, 2147483648
        %v1947 = vsel %vm1945, %v1946, %v1938
        %v1948 = vsel %vm1941, %v1944, %v1947
        %v1949 = vsel %vm1939, nan, %v1948
        %v1950 = vsub.f32 1.0, %v1949
        %v1951 = vsub.f32 %v1621, %v1795
        %v1953 = vrot.slane %v1601, 7
        %v1955 = vmul.f32 %v1628, %v1953
        %v1957 = vrot.slane %v1600, 6
        %v1959 = vmul.f32 %v1631, %v1957
        %v1961 = vrot.slane %v1959, 1
        %v1963 = vsub.f32 %v1955, %v1961
        %v1965 = vrot.slane %v1599, 6
        %v1967 = vmul.f32 %v1631, %v1965
        %v1968 = vmul.f32 %v1624, %v1601
        %v1970 = vrot.slane %v1968, 6
        %v1972 = vsub.f32 %v1967, %v1970
        %v1973 = vmul.f32 %v1624, %v1600
        %v1974 = vrot.slane %v1599, 7
        %v1976 = vmul.f32 %v1628, %v1974
        %v1978 = vrot.slane %v1976, 1
        %v1980 = vsub.f32 %v1973, %v1978
        %v1982 = vrot.slane %v1640, 5
        %v1984 = vmul.f32 %v1628, %v1982
        %v1986 = vrot.slane %v1637, 3
        %v1988 = vmul.f32 %v1631, %v1986
        %v1990 = vrot.slane %v1988, 1
        %v1992 = vsub.f32 %v1984, %v1990
        %v1994 = vrot.slane %v1634, 2
        %v1996 = vmul.f32 %v1631, %v1994
        %v1997 = vrot.slane %v1640, 6
        %v1999 = vmul.f32 %v1624, %v1997
        %v2001 = vrot.slane %v1999, 6
        %v2003 = vsub.f32 %v1996, %v2001
        %v2004 = vrot.slane %v1637, 5
        %v2006 = vmul.f32 %v1624, %v2004
        %v2007 = vrot.slane %v1634, 3
        %v2009 = vmul.f32 %v1628, %v2007
        %v2011 = vrot.slane %v2009, 1
        %v2013 = vsub.f32 %v2006, %v2011
        %v2014 = vmul.f32 %v1624, %v1599
        %v2015 = vrot.slane %v1600, 7
        %v2017 = vmul.f32 %v1628, %v2015
        %v2019 = vrot.slane %v2017, 1
        %v2021 = vadd.f32 %v2014, %v2019
        %v2022 = vrot.slane %v1601, 6
        %v2024 = vmul.f32 %v1631, %v2022
        %v2026 = vrot.slane %v2024, 2
        %v2028 = vadd.f32 %v2021, %v2026
        %v2029 = vrot.slane %v1634, 4
        %v2031 = vmul.f32 %v1624, %v2029
        %v2032 = vrot.slane %v1637, 4
        %v2034 = vmul.f32 %v1628, %v2032
        %v2036 = vrot.slane %v2034, 1
        %v2038 = vadd.f32 %v2031, %v2036
        %v2039 = vrot.slane %v1640, 4
        %v2041 = vmul.f32 %v1631, %v2039
        %v2043 = vrot.slane %v2041, 2
        %v2045 = vadd.f32 %v2038, %v2043
        %v2046 = vmul.f32 %v1950, %v2028
        %v2047 = vmul.f32 %v1949, %v1599
        %v2049 = vrot.slane %v1963, 1
        %v2051 = vmul.f32 %v1795, %v2049
        %v2052 = vadd.f32 %v2047, %v2051
        %v2053 = vmul.f32 %v2046, %v1624
        %v2054 = vadd.f32 %v2052, %v2053
        %v2055 = vmul.f32 %v1621, %v2029
        %v2057 = vrot.slane %v1992, 1
        %v2059 = vmul.f32 %v1950, %v2057
        %v2060 = vadd.f32 %v2055, %v2059
        %v2061 = vmul.f32 %v2045, %v1624
        %v2062 = vsub.f32 %v2061, %v2029
        %v2063 = vmul.f32 %v1951, %v2062
        %v2064 = vadd.f32 %v2060, %v2063
        %v2065 = vadd.f32 %v2054, %v2064
        %v2066 = vmul.f32 %v1949, %v1600
        %v2068 = vrot.slane %v1972, 2
        %v2070 = vmul.f32 %v1795, %v2068
        %v2071 = vadd.f32 %v2066, %v2070
        %v2073 = vrot.slane %v1628, 1
        %v2075 = vmul.f32 %v2046, %v2073
        %v2076 = vadd.f32 %v2071, %v2075
        %v2077 = vmul.f32 %v1621, %v2004
        %v2079 = vrot.slane %v2003, 2
        %v2081 = vmul.f32 %v1950, %v2079
        %v2082 = vadd.f32 %v2077, %v2081
        %v2083 = vmul.f32 %v2045, %v2073
        %v2084 = vsub.f32 %v2083, %v2004
        %v2085 = vmul.f32 %v1951, %v2084
        %v2086 = vadd.f32 %v2082, %v2085
        %v2087 = vadd.f32 %v2076, %v2086
        %v2088 = vmul.f32 %v1949, %v1601
        %v2089 = vmul.f32 %v1795, %v1980
        %v2090 = vadd.f32 %v2088, %v2089
        %v2092 = vrot.slane %v1631, 2
        %v2094 = vmul.f32 %v2046, %v2092
        %v2095 = vadd.f32 %v2090, %v2094
        %v2096 = vmul.f32 %v1621, %v1997
        %v2097 = vmul.f32 %v1950, %v2013
        %v2098 = vadd.f32 %v2096, %v2097
        %v2099 = vmul.f32 %v2045, %v2092
        %v2100 = vsub.f32 %v2099, %v1997
        %v2101 = vmul.f32 %v1951, %v2100
        %v2102 = vadd.f32 %v2098, %v2101
        %v2103 = vadd.f32 %v2095, %v2102
        %2104 = vst [vmem:[%s312] sm:$0x1] %v2065
        %2105 = vst [vmem:[%s312 + $0x1] sm:$0x1] %v2087
        %2106 = vst [vmem:[%s312 + $0x2] sm:$0x1] %v2103
        %s2107 = sand.u32 %s208, 1
        %s2108 = scalar_lea.sflag [#allocation3], %s2107
        %s2109 = sand.u32 %s208, 1
        %s2110 = smul.addr %s2109, 4
        %s2111 = scalar_lea.vmem [#allocation2], %s2110
        // Predicated region
        $region53: #{tpu_custom_call.1} parent=51 // pred_check
          %p2112 = pneg %p218
        $region54: #{tpu_custom_call.1} parent=51 // pred_check_branch
          %2114 = sbr.rel (%p2112) target = $region56
        $region55: #{tpu_custom_call.1} parent=51 // pred_region
          %2116 = vsyncadd %s2108, 0
          %s2117 = smul.addr %s22, 4
          %s2118 = scalar_lea.hbm %s8, %s2117
          %s2120 = sshll.u32 %s2111, 4
          %s2121 = int_to_ptr.vmem [resolvable:$true] %s2120
          %s2122 = sshll.u32 %s2118, 4
          %s2123 = int_to_ptr.hbm [resolvable:$true] %s2122
          %2125 = dma.vmem_to_hbm [thread:$0]  %s2121, 64, %s2123, %s2108
        $region56: #{tpu_custom_call.1} parent=51 // pred_fallthru
          _
      $region52: #{tpu_custom_call.1} parent=5 // pred_fallthru
        _
      %p2126 = scmp.le.s32.totalorder 2, %s17
      // Predicated region
      $region57: #{tpu_custom_call.1} parent=5 // pred_check
        %p2127 = pneg %p2126
      $region58: #{tpu_custom_call.1} parent=5 // pred_check_branch
        %2129 = sbr.rel (%p2127) target = $region60
      $region59: #{tpu_custom_call.1} parent=5 // pred_region
        %s2130 = ssub.s32 %s17, 2
        // Predicated region
        $region61: #{tpu_custom_call.1} parent=59 // pred_check
          %p2131 = pneg %p224
        $region62: #{tpu_custom_call.1} parent=59 // pred_check_branch
          %2133 = sbr.rel (%p2131) target = $region64
        $region63: #{tpu_custom_call.1} parent=59 // pred_region
          %s2134 = sand.u32 %s209, 1
          %s2135 = scalar_lea.sflag [#allocation3], %s2134
          %s2136 = sand.u32 %s209, 1
          %s2137 = smul.addr %s2136, 4
          %s2138 = scalar_lea.vmem [#allocation2], %s2137
          %2140 = dma.done %s2135, 64
        $region64: #{tpu_custom_call.1} parent=59 // pred_fallthru
          _
      $region60: #{tpu_custom_call.1} parent=5 // pred_fallthru
        _
    $region6: #{tpu_custom_call.1} parent=1 // loop_footer
      %s21 = sadd.s32 1, %s17
    $region7: #{tpu_custom_call.1} parent=1 // loop_footer_branch
      %16 = sbr.rel target = $region3
    $region8: #{tpu_custom_call.1} parent=1 // loop_exit
      _
    %2141 = vsyncpa [#allocation3], 1
    %s2142 = scalar_lea.sflag [#allocation3], 1
    %2143 = vsyncpa %s2142, 1

</llo_original>
